<compile_context>
chip_gen: v5e
topology: v5e:2x2
jax: 0.10.0
libtpu: 0.0.40
codegen_flags: <defaults>
</compile_context>

<pallas_src>
import numpy as np
import jax
import jax.numpy as jnp
from jax import lax
from jax.experimental import pallas as pl
from jax.experimental.pallas import tpu as pltpu

H, W = 32, 128              # plate raster; H * W == 4096 (fixed by fc_weight)
N_TMPL = 66                 # number of character templates (repeat_interleave factor)
N_CHARS = 8                 # output character slots
ROW_LO, ROW_HI = 5, 26      # fc_weight only touches plate rows 5..25
N_ROWS = ROW_HI - ROW_LO    # 21 nonzero rows (flat K-slice 640:3328)

# Per-step batch fold.  Per-element block cost is ~18 KiB per pipeline buffer
# (sr 32x128xf32 = 16 KiB + out 66x8xf32 ~ 2 KiB); at 256 elements/step the
# double-buffered working set (plus the ~0.7 MiB resident template) is ~11 MiB,
# under every generation's default scoped-VMEM window (v5e 16 MiB, v6e/v7x
# 32 MiB), while the ~0.35us per-step pipeline overhead drops below 1%.
_TB_MAX = 256


def _build_fc_weight() -> np.ndarray:
    """Exact replica of the MatchHead.__init__ fc_weight construction."""
    fc = np.zeros((H * W, N_CHARS), dtype=np.float32)
    for i in range(8):
        for j in range(5, 26):
            fc[i * 16 + j * 128: i * 16 + j * 128 + 16, i] = 1.0
    return fc


def _match_head_kernel(sr_ref, tmpl_ref, w_ref, out_ref):
    # sr_ref:   (TB, 32, 128) f32  full plate raster for TB batch elements
    # tmpl_ref: (21, 66, 128) f32  templates for plate rows 5..25 (grid-resident)
    # w_ref:    (128, 8)      f32  per-column fc weights (shared by rows 5..25)
    # out_ref:  (TB, 66, 8)   f32
    tb = out_ref.shape[0]

    def one_elem(b, carry):
        # Stage 1: VALU row-sum of |sr - tmpl| over the 21 nonzero plate rows.
        # Each sr row is loaded directly from VMEM as a (1, 128) slice (no XLU
        # extraction out of a packed multi-vreg value) and broadcast across the
        # 66 template sublanes by the subtract.
        def row(j):
            return sr_ref[b, pl.ds(ROW_LO + j, 1), :]            # (1, 128)

        acc = jnp.abs(tmpl_ref[0] - row(0))                       # (66, 128)
        for j in range(1, N_ROWS):                                # static 21-row unroll
            acc = acc + jnp.abs(tmpl_ref[j] - row(j))
        # Stage 2: one tiny (66,128)@(128,8) MXU push collapsing the 8 lane
        # groups of 16 columns; off the VALU-bound critical path.
        out_ref[b] = jnp.dot(acc, w_ref[...],
                             preferred_element_type=jnp.float32).astype(out_ref.dtype)
        return carry

    # Bounded unroll: enough to hide one element's MXU pop / output store under
    # the next element's VPU work without blowing up register pressure.
    lax.fori_loop(0, tb, one_elem, 0, unroll=max(1, min(2, tb)))


def _num_tensorcores_per_chip():
    """Best-effort TensorCores-per-chip: 2 on v7x (and megacore v4/v5p), else 1."""
    try:
        kind = str(jax.devices()[0].device_kind).lower()
    except Exception:
        return 1
    if any(tag in kind for tag in ("v7", "v5p", "v4")):
        return 2
    return 1


def _cdiv(a, b):
    return -(-a // b)


def _grid_plan(batch):
    """One maximal block per TensorCore; add steps only if a step would exceed
    the VMEM-safe per-step batch fold."""
    batch = max(int(batch), 1)
    ntc = _num_tensorcores_per_chip()
    nsteps = max(ntc, _cdiv(batch, _TB_MAX))
    nsteps = _cdiv(nsteps, ntc) * ntc          # equal sharding across TCs
    nsteps = min(nsteps, batch)                # never more steps than elements
    tb = _cdiv(batch, nsteps)
    nsteps = _cdiv(batch, tb)
    return tb, nsteps


def prepare_match_head_constants(plate_template, fc_weight):
    """One-time prep of the grid-resident operands (hoisted out of the per-call path).

    Exploits -- and verifies -- the fixed fc_weight structure: rows 5..25 of the
    32x128 raster all share one per-column 0/1 pattern; every other row is zero.
    """
    fc_np = np.asarray(fc_weight, np.float32)
    if fc_np.shape != (H * W, N_CHARS):
        raise ValueError(f"fc_weight must be {(H * W, N_CHARS)}, got {fc_np.shape}")
    fc3 = fc_np.reshape(H, W, N_CHARS)
    w_col_np = fc3[ROW_LO]                                        # (128, 8)
    expected = np.zeros_like(fc3)
    expected[ROW_LO:ROW_HI] = w_col_np
    if not np.array_equal(fc3, expected):
        raise ValueError(
            "fc_weight does not have the factorizable MatchHead structure "
            "(rows 5..25 sharing one per-column pattern, all other rows zero); "
            "the factorized Pallas kernel would silently be wrong for these weights.")

    tmpl = jnp.asarray(plate_template, jnp.float32).reshape(N_TMPL, H, W)
    tmpl_t = jnp.transpose(tmpl[:, ROW_LO:ROW_HI, :], (1, 0, 2))  # (21, 66, 128)
    w_col = jnp.asarray(w_col_np)                                 # (128, 8)
    return tmpl_t, w_col


def match_head_pallas(align_plate, tmpl_t, w_col):
    """align_plate: (B, 1, H, W) NCHW -> returns (B, 66, 8) (MatchHead.forward)."""
    B = align_plate.shape[0]
    # Keep the full (H, W) raster; the 5..25 row window is read inside the
    # kernel, so no pre-kernel slice copy of the activation is materialized.
    sr = align_plate.reshape(B, H, W).astype(jnp.float32)          # (B, 32, 128)

    tb, nsteps = _grid_plan(B)
    b_pad = nsteps * tb
    if b_pad != B:          # at most nsteps-1 pad elements; skipped when nsteps | B
        sr = jnp.pad(sr, ((0, b_pad - B), (0, 0), (0, 0)))

    grid_spec = pltpu.PrefetchScalarGridSpec(
        num_scalar_prefetch=0,
        grid=(nsteps,),
        in_specs=[
            pl.BlockSpec((tb, H, W), lambda b: (b, 0, 0)),            # per-step batch slab
            pl.BlockSpec((N_ROWS, N_TMPL, W), lambda b: (0, 0, 0)),   # templates (resident)
            pl.BlockSpec((W, N_CHARS), lambda b: (0, 0)),             # reduced fc weights
        ],
        out_specs=pl.BlockSpec((tb, N_TMPL, N_CHARS), lambda b: (b, 0, 0)),
    )

    out = pl.pallas_call(
        _match_head_kernel,
        out_shape=jax.ShapeDtypeStruct((b_pad, N_TMPL, N_CHARS), jnp.float32),
        grid_spec=grid_spec,
        compiler_params=pltpu.CompilerParams(
            dimension_semantics=("parallel",)),
    )(sr, tmpl_t, w_col)
    return out if b_pad == B else out[:B]


def match_head_reference(align_plate, plate_template, fc_weight):
    """Plain-JAX replica of MatchHead.forward (full 4096-K matmul) for validation."""
    B = align_plate.shape[0]
    x = jnp.broadcast_to(align_plate, (B, N_TMPL, H, W))       # repeat_interleave(66, dim=1)
    x = jnp.abs(x - plate_template[None])
    x = x.reshape(B, N_TMPL, H * W)
    return jnp.matmul(x, fc_weight, precision=jax.lax.Precision.HIGHEST)


if __name__ == "__main__":
    key = jax.random.PRNGKey(0)
    k_plate, k_tmpl = jax.random.split(key)

    B = 2
    # align_plate: output of align_header (1 channel), NCHW.
    align_plate = jax.random.uniform(k_plate, (B, 1, H, W), dtype=jnp.float32)
    # plate_template: deterministic synthetic stand-in for torch.load(...).
    plate_template = jax.random.uniform(k_tmpl, (N_TMPL, H, W), dtype=jnp.float32)
    fc_weight = jnp.asarray(_build_fc_weight())

    tmpl_t, w_col = prepare_match_head_constants(plate_template, fc_weight)
    out = match_head_pallas(align_plate, tmpl_t, w_col)
    out = jax.block_until_ready(out)

    ref = match_head_reference(align_plate, plate_template, fc_weight)
    # Different (but exact) summation factorization vs. the reference's K=4096 matmul,
    # so allow slightly looser f32 reassociation tolerance.
    np.testing.assert_allclose(np.asarray(out), np.asarray(ref), rtol=1e-4, atol=1e-3)

    print("KERNEL_OK")
</pallas_src>

<mosaic_0001>
module attributes {stable_mosaic.version = 11 : i64} {
  func.func @_match_head_kernel(%arg0: i32, %arg1: memref<2x32x128xf32, #tpu.memory_space<vmem>>, %arg2: memref<21x66x128xf32, #tpu.memory_space<vmem>>, %arg3: memref<128x8xf32, #tpu.memory_space<vmem>>, %arg4: memref<2x66x8xf32, #tpu.memory_space<vmem>>) attributes {dimension_semantics = [#tpu.dimension_semantics<parallel>], iteration_bounds = array<i64: 1>, scalar_prefetch = 0 : i64, scratch_operands = 0 : i64, tpu.core_type = #tpu.core_type<tc>, window_params = [{transform_indices = @transform_0, window_bounds = array<i64: 2, 32, 128>}, {pipeline_mode = #tpu.pipeline_mode<synchronous>, transform_indices = @transform_1, window_bounds = array<i64: 21, 66, 128>}, {pipeline_mode = #tpu.pipeline_mode<synchronous>, transform_indices = @transform_2, window_bounds = array<i64: 128, 8>}, {transform_indices = @transform_3, window_bounds = array<i64: 2, 66, 8>}]} {
    %c0_i32 = arith.constant 0 : i32
    %c0 = arith.constant 0 : index
    %c0_0 = arith.constant 0 : index
    %c0_1 = arith.constant 0 : index
    %0 = vector.load %arg2[%c0, %c0_0, %c0_1] : memref<21x66x128xf32, #tpu.memory_space<vmem>>, vector<1x66x128xf32>
    %1 = vector.shape_cast %0 : vector<1x66x128xf32> to vector<66x128xf32>
    %2 = arith.index_cast %c0_i32 : i32 to index
    %c5 = arith.constant 5 : index
    %c0_2 = arith.constant 0 : index
    %3 = vector.load %arg1[%2, %c5, %c0_2] : memref<2x32x128xf32, #tpu.memory_space<vmem>>, vector<1x1x128xf32>
    %4 = vector.shape_cast %3 : vector<1x1x128xf32> to vector<1x128xf32>
    %5 = vector.broadcast %4 : vector<1x128xf32> to vector<66x128xf32>
    %6 = arith.subf %1, %5 : vector<66x128xf32>
    %7 = math.absf %6 : vector<66x128xf32>
    %c1 = arith.constant 1 : index
    %c0_3 = arith.constant 0 : index
    %c0_4 = arith.constant 0 : index
    %8 = vector.load %arg2[%c1, %c0_3, %c0_4] : memref<21x66x128xf32, #tpu.memory_space<vmem>>, vector<1x66x128xf32>
    %9 = vector.shape_cast %8 : vector<1x66x128xf32> to vector<66x128xf32>
    %10 = arith.index_cast %c0_i32 : i32 to index
    %c6 = arith.constant 6 : index
    %c0_5 = arith.constant 0 : index
    %11 = vector.load %arg1[%10, %c6, %c0_5] : memref<2x32x128xf32, #tpu.memory_space<vmem>>, vector<1x1x128xf32>
    %12 = vector.shape_cast %11 : vector<1x1x128xf32> to vector<1x128xf32>
    %13 = vector.broadcast %12 : vector<1x128xf32> to vector<66x128xf32>
    %14 = arith.subf %9, %13 : vector<66x128xf32>
    %15 = math.absf %14 : vector<66x128xf32>
    %16 = arith.addf %7, %15 : vector<66x128xf32>
    %c2 = arith.constant 2 : index
    %c0_6 = arith.constant 0 : index
    %c0_7 = arith.constant 0 : index
    %17 = vector.load %arg2[%c2, %c0_6, %c0_7] : memref<21x66x128xf32, #tpu.memory_space<vmem>>, vector<1x66x128xf32>
    %18 = vector.shape_cast %17 : vector<1x66x128xf32> to vector<66x128xf32>
    %19 = arith.index_cast %c0_i32 : i32 to index
    %c7 = arith.constant 7 : index
    %c0_8 = arith.constant 0 : index
    %20 = vector.load %arg1[%19, %c7, %c0_8] : memref<2x32x128xf32, #tpu.memory_space<vmem>>, vector<1x1x128xf32>
    %21 = vector.shape_cast %20 : vector<1x1x128xf32> to vector<1x128xf32>
    %22 = vector.broadcast %21 : vector<1x128xf32> to vector<66x128xf32>
    %23 = arith.subf %18, %22 : vector<66x128xf32>
    %24 = math.absf %23 : vector<66x128xf32>
    %25 = arith.addf %16, %24 : vector<66x128xf32>
    %c3 = arith.constant 3 : index
    %c0_9 = arith.constant 0 : index
    %c0_10 = arith.constant 0 : index
    %26 = vector.load %arg2[%c3, %c0_9, %c0_10] : memref<21x66x128xf32, #tpu.memory_space<vmem>>, vector<1x66x128xf32>
    %27 = vector.shape_cast %26 : vector<1x66x128xf32> to vector<66x128xf32>
    %28 = arith.index_cast %c0_i32 : i32 to index
    %c8 = arith.constant 8 : index
    %c0_11 = arith.constant 0 : index
    %29 = vector.load %arg1[%28, %c8, %c0_11] : memref<2x32x128xf32, #tpu.memory_space<vmem>>, vector<1x1x128xf32>
    %30 = vector.shape_cast %29 : vector<1x1x128xf32> to vector<1x128xf32>
    %31 = vector.broadcast %30 : vector<1x128xf32> to vector<66x128xf32>
    %32 = arith.subf %27, %31 : vector<66x128xf32>
    %33 = math.absf %32 : vector<66x128xf32>
    %34 = arith.addf %25, %33 : vector<66x128xf32>
    %c4 = arith.constant 4 : index
    %c0_12 = arith.constant 0 : index
    %c0_13 = arith.constant 0 : index
    %35 = vector.load %arg2[%c4, %c0_12, %c0_13] : memref<21x66x128xf32, #tpu.memory_space<vmem>>, vector<1x66x128xf32>
    %36 = vector.shape_cast %35 : vector<1x66x128xf32> to vector<66x128xf32>
    %37 = arith.index_cast %c0_i32 : i32 to index
    %c9 = arith.constant 9 : index
    %c0_14 = arith.constant 0 : index
    %38 = vector.load %arg1[%37, %c9, %c0_14] : memref<2x32x128xf32, #tpu.memory_space<vmem>>, vector<1x1x128xf32>
    %39 = vector.shape_cast %38 : vector<1x1x128xf32> to vector<1x128xf32>
    %40 = vector.broadcast %39 : vector<1x128xf32> to vector<66x128xf32>
    %41 = arith.subf %36, %40 : vector<66x128xf32>
    %42 = math.absf %41 : vector<66x128xf32>
    %43 = arith.addf %34, %42 : vector<66x128xf32>
    %c5_15 = arith.constant 5 : index
    %c0_16 = arith.constant 0 : index
    %c0_17 = arith.constant 0 : index
    %44 = vector.load %arg2[%c5_15, %c0_16, %c0_17] : memref<21x66x128xf32, #tpu.memory_space<vmem>>, vector<1x66x128xf32>
    %45 = vector.shape_cast %44 : vector<1x66x128xf32> to vector<66x128xf32>
    %46 = arith.index_cast %c0_i32 : i32 to index
    %c10 = arith.constant 10 : index
    %c0_18 = arith.constant 0 : index
    %47 = vector.load %arg1[%46, %c10, %c0_18] : memref<2x32x128xf32, #tpu.memory_space<vmem>>, vector<1x1x128xf32>
    %48 = vector.shape_cast %47 : vector<1x1x128xf32> to vector<1x128xf32>
    %49 = vector.broadcast %48 : vector<1x128xf32> to vector<66x128xf32>
    %50 = arith.subf %45, %49 : vector<66x128xf32>
    %51 = math.absf %50 : vector<66x128xf32>
    %52 = arith.addf %43, %51 : vector<66x128xf32>
    %c6_19 = arith.constant 6 : index
    %c0_20 = arith.constant 0 : index
    %c0_21 = arith.constant 0 : index
    %53 = vector.load %arg2[%c6_19, %c0_20, %c0_21] : memref<21x66x128xf32, #tpu.memory_space<vmem>>, vector<1x66x128xf32>
    %54 = vector.shape_cast %53 : vector<1x66x128xf32> to vector<66x128xf32>
    %55 = arith.index_cast %c0_i32 : i32 to index
    %c11 = arith.constant 11 : index
    %c0_22 = arith.constant 0 : index
    %56 = vector.load %arg1[%55, %c11, %c0_22] : memref<2x32x128xf32, #tpu.memory_space<vmem>>, vector<1x1x128xf32>
    %57 = vector.shape_cast %56 : vector<1x1x128xf32> to vector<1x128xf32>
    %58 = vector.broadcast %57 : vector<1x128xf32> to vector<66x128xf32>
    %59 = arith.subf %54, %58 : vector<66x128xf32>
    %60 = math.absf %59 : vector<66x128xf32>
    %61 = arith.addf %52, %60 : vector<66x128xf32>
    %c7_23 = arith.constant 7 : index
    %c0_24 = arith.constant 0 : index
    %c0_25 = arith.constant 0 : index
    %62 = vector.load %arg2[%c7_23, %c0_24, %c0_25] : memref<21x66x128xf32, #tpu.memory_space<vmem>>, vector<1x66x128xf32>
    %63 = vector.shape_cast %62 : vector<1x66x128xf32> to vector<66x128xf32>
    %64 = arith.index_cast %c0_i32 : i32 to index
    %c12 = arith.constant 12 : index
    %c0_26 = arith.constant 0 : index
    %65 = vector.load %arg1[%64, %c12, %c0_26] : memref<2x32x128xf32, #tpu.memory_space<vmem>>, vector<1x1x128xf32>
    %66 = vector.shape_cast %65 : vector<1x1x128xf32> to vector<1x128xf32>
    %67 = vector.broadcast %66 : vector<1x128xf32> to vector<66x128xf32>
    %68 = arith.subf %63, %67 : vector<66x128xf32>
    %69 = math.absf %68 : vector<66x128xf32>
    %70 = arith.addf %61, %69 : vector<66x128xf32>
    %c8_27 = arith.constant 8 : index
    %c0_28 = arith.constant 0 : index
    %c0_29 = arith.constant 0 : index
    %71 = vector.load %arg2[%c8_27, %c0_28, %c0_29] : memref<21x66x128xf32, #tpu.memory_space<vmem>>, vector<1x66x128xf32>
    %72 = vector.shape_cast %71 : vector<1x66x128xf32> to vector<66x128xf32>
    %73 = arith.index_cast %c0_i32 : i32 to index
    %c13 = arith.constant 13 : index
    %c0_30 = arith.constant 0 : index
    %74 = vector.load %arg1[%73, %c13, %c0_30] : memref<2x32x128xf32, #tpu.memory_space<vmem>>, vector<1x1x128xf32>
    %75 = vector.shape_cast %74 : vector<1x1x128xf32> to vector<1x128xf32>
    %76 = vector.broadcast %75 : vector<1x128xf32> to vector<66x128xf32>
    %77 = arith.subf %72, %76 : vector<66x128xf32>
    %78 = math.absf %77 : vector<66x128xf32>
    %79 = arith.addf %70, %78 : vector<66x128xf32>
    %c9_31 = arith.constant 9 : index
    %c0_32 = arith.constant 0 : index
    %c0_33 = arith.constant 0 : index
    %80 = vector.load %arg2[%c9_31, %c0_32, %c0_33] : memref<21x66x128xf32, #tpu.memory_space<vmem>>, vector<1x66x128xf32>
    %81 = vector.shape_cast %80 : vector<1x66x128xf32> to vector<66x128xf32>
    %82 = arith.index_cast %c0_i32 : i32 to index
    %c14 = arith.constant 14 : index
    %c0_34 = arith.constant 0 : index
    %83 = vector.load %arg1[%82, %c14, %c0_34] : memref<2x32x128xf32, #tpu.memory_space<vmem>>, vector<1x1x128xf32>
    %84 = vector.shape_cast %83 : vector<1x1x128xf32> to vector<1x128xf32>
    %85 = vector.broadcast %84 : vector<1x128xf32> to vector<66x128xf32>
    %86 = arith.subf %81, %85 : vector<66x128xf32>
    %87 = math.absf %86 : vector<66x128xf32>
    %88 = arith.addf %79, %87 : vector<66x128xf32>
    %c10_35 = arith.constant 10 : index
    %c0_36 = arith.constant 0 : index
    %c0_37 = arith.constant 0 : index
    %89 = vector.load %arg2[%c10_35, %c0_36, %c0_37] : memref<21x66x128xf32, #tpu.memory_space<vmem>>, vector<1x66x128xf32>
    %90 = vector.shape_cast %89 : vector<1x66x128xf32> to vector<66x128xf32>
    %91 = arith.index_cast %c0_i32 : i32 to index
    %c15 = arith.constant 15 : index
    %c0_38 = arith.constant 0 : index
    %92 = vector.load %arg1[%91, %c15, %c0_38] : memref<2x32x128xf32, #tpu.memory_space<vmem>>, vector<1x1x128xf32>
    %93 = vector.shape_cast %92 : vector<1x1x128xf32> to vector<1x128xf32>
    %94 = vector.broadcast %93 : vector<1x128xf32> to vector<66x128xf32>
    %95 = arith.subf %90, %94 : vector<66x128xf32>
    %96 = math.absf %95 : vector<66x128xf32>
    %97 = arith.addf %88, %96 : vector<66x128xf32>
    %c11_39 = arith.constant 11 : index
    %c0_40 = arith.constant 0 : index
    %c0_41 = arith.constant 0 : index
    %98 = vector.load %arg2[%c11_39, %c0_40, %c0_41] : memref<21x66x128xf32, #tpu.memory_space<vmem>>, vector<1x66x128xf32>
    %99 = vector.shape_cast %98 : vector<1x66x128xf32> to vector<66x128xf32>
    %100 = arith.index_cast %c0_i32 : i32 to index
    %c16 = arith.constant 16 : index
    %c0_42 = arith.constant 0 : index
    %101 = vector.load %arg1[%100, %c16, %c0_42] : memref<2x32x128xf32, #tpu.memory_space<vmem>>, vector<1x1x128xf32>
    %102 = vector.shape_cast %101 : vector<1x1x128xf32> to vector<1x128xf32>
    %103 = vector.broadcast %102 : vector<1x128xf32> to vector<66x128xf32>
    %104 = arith.subf %99, %103 : vector<66x128xf32>
    %105 = math.absf %104 : vector<66x128xf32>
    %106 = arith.addf %97, %105 : vector<66x128xf32>
    %c12_43 = arith.constant 12 : index
    %c0_44 = arith.constant 0 : index
    %c0_45 = arith.constant 0 : index
    %107 = vector.load %arg2[%c12_43, %c0_44, %c0_45] : memref<21x66x128xf32, #tpu.memory_space<vmem>>, vector<1x66x128xf32>
    %108 = vector.shape_cast %107 : vector<1x66x128xf32> to vector<66x128xf32>
    %109 = arith.index_cast %c0_i32 : i32 to index
    %c17 = arith.constant 17 : index
    %c0_46 = arith.constant 0 : index
    %110 = vector.load %arg1[%109, %c17, %c0_46] : memref<2x32x128xf32, #tpu.memory_space<vmem>>, vector<1x1x128xf32>
    %111 = vector.shape_cast %110 : vector<1x1x128xf32> to vector<1x128xf32>
    %112 = vector.broadcast %111 : vector<1x128xf32> to vector<66x128xf32>
    %113 = arith.subf %108, %112 : vector<66x128xf32>
    %114 = math.absf %113 : vector<66x128xf32>
    %115 = arith.addf %106, %114 : vector<66x128xf32>
    %c13_47 = arith.constant 13 : index
    %c0_48 = arith.constant 0 : index
    %c0_49 = arith.constant 0 : index
    %116 = vector.load %arg2[%c13_47, %c0_48, %c0_49] : memref<21x66x128xf32, #tpu.memory_space<vmem>>, vector<1x66x128xf32>
    %117 = vector.shape_cast %116 : vector<1x66x128xf32> to vector<66x128xf32>
    %118 = arith.index_cast %c0_i32 : i32 to index
    %c18 = arith.constant 18 : index
    %c0_50 = arith.constant 0 : index
    %119 = vector.load %arg1[%118, %c18, %c0_50] : memref<2x32x128xf32, #tpu.memory_space<vmem>>, vector<1x1x128xf32>
    %120 = vector.shape_cast %119 : vector<1x1x128xf32> to vector<1x128xf32>
    %121 = vector.broadcast %120 : vector<1x128xf32> to vector<66x128xf32>
    %122 = arith.subf %117, %121 : vector<66x128xf32>
    %123 = math.absf %122 : vector<66x128xf32>
    %124 = arith.addf %115, %123 : vector<66x128xf32>
    %c14_51 = arith.constant 14 : index
    %c0_52 = arith.constant 0 : index
    %c0_53 = arith.constant 0 : index
    %125 = vector.load %arg2[%c14_51, %c0_52, %c0_53] : memref<21x66x128xf32, #tpu.memory_space<vmem>>, vector<1x66x128xf32>
    %126 = vector.shape_cast %125 : vector<1x66x128xf32> to vector<66x128xf32>
    %127 = arith.index_cast %c0_i32 : i32 to index
    %c19 = arith.constant 19 : index
    %c0_54 = arith.constant 0 : index
    %128 = vector.load %arg1[%127, %c19, %c0_54] : memref<2x32x128xf32, #tpu.memory_space<vmem>>, vector<1x1x128xf32>
    %129 = vector.shape_cast %128 : vector<1x1x128xf32> to vector<1x128xf32>
    %130 = vector.broadcast %129 : vector<1x128xf32> to vector<66x128xf32>
    %131 = arith.subf %126, %130 : vector<66x128xf32>
    %132 = math.absf %131 : vector<66x128xf32>
    %133 = arith.addf %124, %132 : vector<66x128xf32>
    %c15_55 = arith.constant 15 : index
    %c0_56 = arith.constant 0 : index
    %c0_57 = arith.constant 0 : index
    %134 = vector.load %arg2[%c15_55, %c0_56, %c0_57] : memref<21x66x128xf32, #tpu.memory_space<vmem>>, vector<1x66x128xf32>
    %135 = vector.shape_cast %134 : vector<1x66x128xf32> to vector<66x128xf32>
    %136 = arith.index_cast %c0_i32 : i32 to index
    %c20 = arith.constant 20 : index
    %c0_58 = arith.constant 0 : index
    %137 = vector.load %arg1[%136, %c20, %c0_58] : memref<2x32x128xf32, #tpu.memory_space<vmem>>, vector<1x1x128xf32>
    %138 = vector.shape_cast %137 : vector<1x1x128xf32> to vector<1x128xf32>
    %139 = vector.broadcast %138 : vector<1x128xf32> to vector<66x128xf32>
    %140 = arith.subf %135, %139 : vector<66x128xf32>
    %141 = math.absf %140 : vector<66x128xf32>
    %142 = arith.addf %133, %141 : vector<66x128xf32>
    %c16_59 = arith.constant 16 : index
    %c0_60 = arith.constant 0 : index
    %c0_61 = arith.constant 0 : index
    %143 = vector.load %arg2[%c16_59, %c0_60, %c0_61] : memref<21x66x128xf32, #tpu.memory_space<vmem>>, vector<1x66x128xf32>
    %144 = vector.shape_cast %143 : vector<1x66x128xf32> to vector<66x128xf32>
    %145 = arith.index_cast %c0_i32 : i32 to index
    %c21 = arith.constant 21 : index
    %c0_62 = arith.constant 0 : index
    %146 = vector.load %arg1[%145, %c21, %c0_62] : memref<2x32x128xf32, #tpu.memory_space<vmem>>, vector<1x1x128xf32>
    %147 = vector.shape_cast %146 : vector<1x1x128xf32> to vector<1x128xf32>
    %148 = vector.broadcast %147 : vector<1x128xf32> to vector<66x128xf32>
    %149 = arith.subf %144, %148 : vector<66x128xf32>
    %150 = math.absf %149 : vector<66x128xf32>
    %151 = arith.addf %142, %150 : vector<66x128xf32>
    %c17_63 = arith.constant 17 : index
    %c0_64 = arith.constant 0 : index
    %c0_65 = arith.constant 0 : index
    %152 = vector.load %arg2[%c17_63, %c0_64, %c0_65] : memref<21x66x128xf32, #tpu.memory_space<vmem>>, vector<1x66x128xf32>
    %153 = vector.shape_cast %152 : vector<1x66x128xf32> to vector<66x128xf32>
    %154 = arith.index_cast %c0_i32 : i32 to index
    %c22 = arith.constant 22 : index
    %c0_66 = arith.constant 0 : index
    %155 = vector.load %arg1[%154, %c22, %c0_66] : memref<2x32x128xf32, #tpu.memory_space<vmem>>, vector<1x1x128xf32>
    %156 = vector.shape_cast %155 : vector<1x1x128xf32> to vector<1x128xf32>
    %157 = vector.broadcast %156 : vector<1x128xf32> to vector<66x128xf32>
    %158 = arith.subf %153, %157 : vector<66x128xf32>
    %159 = math.absf %158 : vector<66x128xf32>
    %160 = arith.addf %151, %159 : vector<66x128xf32>
    %c18_67 = arith.constant 18 : index
    %c0_68 = arith.constant 0 : index
    %c0_69 = arith.constant 0 : index
    %161 = vector.load %arg2[%c18_67, %c0_68, %c0_69] : memref<21x66x128xf32, #tpu.memory_space<vmem>>, vector<1x66x128xf32>
    %162 = vector.shape_cast %161 : vector<1x66x128xf32> to vector<66x128xf32>
    %163 = arith.index_cast %c0_i32 : i32 to index
    %c23 = arith.constant 23 : index
    %c0_70 = arith.constant 0 : index
    %164 = vector.load %arg1[%163, %c23, %c0_70] : memref<2x32x128xf32, #tpu.memory_space<vmem>>, vector<1x1x128xf32>
    %165 = vector.shape_cast %164 : vector<1x1x128xf32> to vector<1x128xf32>
    %166 = vector.broadcast %165 : vector<1x128xf32> to vector<66x128xf32>
    %167 = arith.subf %162, %166 : vector<66x128xf32>
    %168 = math.absf %167 : vector<66x128xf32>
    %169 = arith.addf %160, %168 : vector<66x128xf32>
    %c19_71 = arith.constant 19 : index
    %c0_72 = arith.constant 0 : index
    %c0_73 = arith.constant 0 : index
    %170 = vector.load %arg2[%c19_71, %c0_72, %c0_73] : memref<21x66x128xf32, #tpu.memory_space<vmem>>, vector<1x66x128xf32>
    %171 = vector.shape_cast %170 : vector<1x66x128xf32> to vector<66x128xf32>
    %172 = arith.index_cast %c0_i32 : i32 to index
    %c24 = arith.constant 24 : index
    %c0_74 = arith.constant 0 : index
    %173 = vector.load %arg1[%172, %c24, %c0_74] : memref<2x32x128xf32, #tpu.memory_space<vmem>>, vector<1x1x128xf32>
    %174 = vector.shape_cast %173 : vector<1x1x128xf32> to vector<1x128xf32>
    %175 = vector.broadcast %174 : vector<1x128xf32> to vector<66x128xf32>
    %176 = arith.subf %171, %175 : vector<66x128xf32>
    %177 = math.absf %176 : vector<66x128xf32>
    %178 = arith.addf %169, %177 : vector<66x128xf32>
    %c20_75 = arith.constant 20 : index
    %c0_76 = arith.constant 0 : index
    %c0_77 = arith.constant 0 : index
    %179 = vector.load %arg2[%c20_75, %c0_76, %c0_77] : memref<21x66x128xf32, #tpu.memory_space<vmem>>, vector<1x66x128xf32>
    %180 = vector.shape_cast %179 : vector<1x66x128xf32> to vector<66x128xf32>
    %181 = arith.index_cast %c0_i32 : i32 to index
    %c25 = arith.constant 25 : index
    %c0_78 = arith.constant 0 : index
    %182 = vector.load %arg1[%181, %c25, %c0_78] : memref<2x32x128xf32, #tpu.memory_space<vmem>>, vector<1x1x128xf32>
    %183 = vector.shape_cast %182 : vector<1x1x128xf32> to vector<1x128xf32>
    %184 = vector.broadcast %183 : vector<1x128xf32> to vector<66x128xf32>
    %185 = arith.subf %180, %184 : vector<66x128xf32>
    %186 = math.absf %185 : vector<66x128xf32>
    %187 = arith.addf %178, %186 : vector<66x128xf32>
    %c0_79 = arith.constant 0 : index
    %c0_80 = arith.constant 0 : index
    %188 = vector.load %arg3[%c0_79, %c0_80] : memref<128x8xf32, #tpu.memory_space<vmem>>, vector<128x8xf32>
    %cst = arith.constant dense<0.000000e+00> : vector<66x8xf32>
    %189 = tpu.matmul %187, %188, %cst {dimension_numbers = #tpu.dot_dimension_numbers<[1], [0], [0], [1], [0, 0, 1, 1], [], []>} : vector<66x128xf32>, vector<128x8xf32>, vector<66x8xf32> -> vector<66x8xf32>
    %190 = arith.index_cast %c0_i32 : i32 to index
    %c0_81 = arith.constant 0 : index
    %c0_82 = arith.constant 0 : index
    %191 = vector.load %arg4[%190, %c0_81, %c0_82] : memref<2x66x8xf32, #tpu.memory_space<vmem>>, vector<1x66x8xf32>
    %192 = vector.shape_cast %191 : vector<1x66x8xf32> to vector<66x8xf32>
    %193 = vector.shape_cast %189 : vector<66x8xf32> to vector<1x66x8xf32>
    tpu.vector_store %arg4[%190, %c0_81, %c0_82], %193 {strides = array<i32>} : memref<2x66x8xf32, #tpu.memory_space<vmem>>, vector<1x66x8xf32>,
    %c1_i32 = arith.constant 1 : i32
    %c0_83 = arith.constant 0 : index
    %c0_84 = arith.constant 0 : index
    %c0_85 = arith.constant 0 : index
    %194 = vector.load %arg2[%c0_83, %c0_84, %c0_85] : memref<21x66x128xf32, #tpu.memory_space<vmem>>, vector<1x66x128xf32>
    %195 = vector.shape_cast %194 : vector<1x66x128xf32> to vector<66x128xf32>
    %196 = arith.index_cast %c1_i32 : i32 to index
    %c5_86 = arith.constant 5 : index
    %c0_87 = arith.constant 0 : index
    %197 = vector.load %arg1[%196, %c5_86, %c0_87] : memref<2x32x128xf32, #tpu.memory_space<vmem>>, vector<1x1x128xf32>
    %198 = vector.shape_cast %197 : vector<1x1x128xf32> to vector<1x128xf32>
    %199 = vector.broadcast %198 : vector<1x128xf32> to vector<66x128xf32>
    %200 = arith.subf %195, %199 : vector<66x128xf32>
    %201 = math.absf %200 : vector<66x128xf32>
    %c1_88 = arith.constant 1 : index
    %c0_89 = arith.constant 0 : index
    %c0_90 = arith.constant 0 : index
    %202 = vector.load %arg2[%c1_88, %c0_89, %c0_90] : memref<21x66x128xf32, #tpu.memory_space<vmem>>, vector<1x66x128xf32>
    %203 = vector.shape_cast %202 : vector<1x66x128xf32> to vector<66x128xf32>
    %204 = arith.index_cast %c1_i32 : i32 to index
    %c6_91 = arith.constant 6 : index
    %c0_92 = arith.constant 0 : index
    %205 = vector.load %arg1[%204, %c6_91, %c0_92] : memref<2x32x128xf32, #tpu.memory_space<vmem>>, vector<1x1x128xf32>
    %206 = vector.shape_cast %205 : vector<1x1x128xf32> to vector<1x128xf32>
    %207 = vector.broadcast %206 : vector<1x128xf32> to vector<66x128xf32>
    %208 = arith.subf %203, %207 : vector<66x128xf32>
    %209 = math.absf %208 : vector<66x128xf32>
    %210 = arith.addf %201, %209 : vector<66x128xf32>
    %c2_93 = arith.constant 2 : index
    %c0_94 = arith.constant 0 : index
    %c0_95 = arith.constant 0 : index
    %211 = vector.load %arg2[%c2_93, %c0_94, %c0_95] : memref<21x66x128xf32, #tpu.memory_space<vmem>>, vector<1x66x128xf32>
    %212 = vector.shape_cast %211 : vector<1x66x128xf32> to vector<66x128xf32>
    %213 = arith.index_cast %c1_i32 : i32 to index
    %c7_96 = arith.constant 7 : index
    %c0_97 = arith.constant 0 : index
    %214 = vector.load %arg1[%213, %c7_96, %c0_97] : memref<2x32x128xf32, #tpu.memory_space<vmem>>, vector<1x1x128xf32>
    %215 = vector.shape_cast %214 : vector<1x1x128xf32> to vector<1x128xf32>
    %216 = vector.broadcast %215 : vector<1x128xf32> to vector<66x128xf32>
    %217 = arith.subf %212, %216 : vector<66x128xf32>
    %218 = math.absf %217 : vector<66x128xf32>
    %219 = arith.addf %210, %218 : vector<66x128xf32>
    %c3_98 = arith.constant 3 : index
    %c0_99 = arith.constant 0 : index
    %c0_100 = arith.constant 0 : index
    %220 = vector.load %arg2[%c3_98, %c0_99, %c0_100] : memref<21x66x128xf32, #tpu.memory_space<vmem>>, vector<1x66x128xf32>
    %221 = vector.shape_cast %220 : vector<1x66x128xf32> to vector<66x128xf32>
    %222 = arith.index_cast %c1_i32 : i32 to index
    %c8_101 = arith.constant 8 : index
    %c0_102 = arith.constant 0 : index
    %223 = vector.load %arg1[%222, %c8_101, %c0_102] : memref<2x32x128xf32, #tpu.memory_space<vmem>>, vector<1x1x128xf32>
    %224 = vector.shape_cast %223 : vector<1x1x128xf32> to vector<1x128xf32>
    %225 = vector.broadcast %224 : vector<1x128xf32> to vector<66x128xf32>
    %226 = arith.subf %221, %225 : vector<66x128xf32>
    %227 = math.absf %226 : vector<66x128xf32>
    %228 = arith.addf %219, %227 : vector<66x128xf32>
    %c4_103 = arith.constant 4 : index
    %c0_104 = arith.constant 0 : index
    %c0_105 = arith.constant 0 : index
    %229 = vector.load %arg2[%c4_103, %c0_104, %c0_105] : memref<21x66x128xf32, #tpu.memory_space<vmem>>, vector<1x66x128xf32>
    %230 = vector.shape_cast %229 : vector<1x66x128xf32> to vector<66x128xf32>
    %231 = arith.index_cast %c1_i32 : i32 to index
    %c9_106 = arith.constant 9 : index
    %c0_107 = arith.constant 0 : index
    %232 = vector.load %arg1[%231, %c9_106, %c0_107] : memref<2x32x128xf32, #tpu.memory_space<vmem>>, vector<1x1x128xf32>
    %233 = vector.shape_cast %232 : vector<1x1x128xf32> to vector<1x128xf32>
    %234 = vector.broadcast %233 : vector<1x128xf32> to vector<66x128xf32>
    %235 = arith.subf %230, %234 : vector<66x128xf32>
    %236 = math.absf %235 : vector<66x128xf32>
    %237 = arith.addf %228, %236 : vector<66x128xf32>
    %c5_108 = arith.constant 5 : index
    %c0_109 = arith.constant 0 : index
    %c0_110 = arith.constant 0 : index
    %238 = vector.load %arg2[%c5_108, %c0_109, %c0_110] : memref<21x66x128xf32, #tpu.memory_space<vmem>>, vector<1x66x128xf32>
    %239 = vector.shape_cast %238 : vector<1x66x128xf32> to vector<66x128xf32>
    %240 = arith.index_cast %c1_i32 : i32 to index
    %c10_111 = arith.constant 10 : index
    %c0_112 = arith.constant 0 : index
    %241 = vector.load %arg1[%240, %c10_111, %c0_112] : memref<2x32x128xf32, #tpu.memory_space<vmem>>, vector<1x1x128xf32>
    %242 = vector.shape_cast %241 : vector<1x1x128xf32> to vector<1x128xf32>
    %243 = vector.broadcast %242 : vector<1x128xf32> to vector<66x128xf32>
    %244 = arith.subf %239, %243 : vector<66x128xf32>
    %245 = math.absf %244 : vector<66x128xf32>
    %246 = arith.addf %237, %245 : vector<66x128xf32>
    %c6_113 = arith.constant 6 : index
    %c0_114 = arith.constant 0 : index
    %c0_115 = arith.constant 0 : index
    %247 = vector.load %arg2[%c6_113, %c0_114, %c0_115] : memref<21x66x128xf32, #tpu.memory_space<vmem>>, vector<1x66x128xf32>
    %248 = vector.shape_cast %247 : vector<1x66x128xf32> to vector<66x128xf32>
    %249 = arith.index_cast %c1_i32 : i32 to index
    %c11_116 = arith.constant 11 : index
    %c0_117 = arith.constant 0 : index
    %250 = vector.load %arg1[%249, %c11_116, %c0_117] : memref<2x32x128xf32, #tpu.memory_space<vmem>>, vector<1x1x128xf32>
    %251 = vector.shape_cast %250 : vector<1x1x128xf32> to vector<1x128xf32>
    %252 = vector.broadcast %251 : vector<1x128xf32> to vector<66x128xf32>
    %253 = arith.subf %248, %252 : vector<66x128xf32>
    %254 = math.absf %253 : vector<66x128xf32>
    %255 = arith.addf %246, %254 : vector<66x128xf32>
    %c7_118 = arith.constant 7 : index
    %c0_119 = arith.constant 0 : index
    %c0_120 = arith.constant 0 : index
    %256 = vector.load %arg2[%c7_118, %c0_119, %c0_120] : memref<21x66x128xf32, #tpu.memory_space<vmem>>, vector<1x66x128xf32>
    %257 = vector.shape_cast %256 : vector<1x66x128xf32> to vector<66x128xf32>
    %258 = arith.index_cast %c1_i32 : i32 to index
    %c12_121 = arith.constant 12 : index
    %c0_122 = arith.constant 0 : index
    %259 = vector.load %arg1[%258, %c12_121, %c0_122] : memref<2x32x128xf32, #tpu.memory_space<vmem>>, vector<1x1x128xf32>
    %260 = vector.shape_cast %259 : vector<1x1x128xf32> to vector<1x128xf32>
    %261 = vector.broadcast %260 : vector<1x128xf32> to vector<66x128xf32>
    %262 = arith.subf %257, %261 : vector<66x128xf32>
    %263 = math.absf %262 : vector<66x128xf32>
    %264 = arith.addf %255, %263 : vector<66x128xf32>
    %c8_123 = arith.constant 8 : index
    %c0_124 = arith.constant 0 : index
    %c0_125 = arith.constant 0 : index
    %265 = vector.load %arg2[%c8_123, %c0_124, %c0_125] : memref<21x66x128xf32, #tpu.memory_space<vmem>>, vector<1x66x128xf32>
    %266 = vector.shape_cast %265 : vector<1x66x128xf32> to vector<66x128xf32>
    %267 = arith.index_cast %c1_i32 : i32 to index
    %c13_126 = arith.constant 13 : index
    %c0_127 = arith.constant 0 : index
    %268 = vector.load %arg1[%267, %c13_126, %c0_127] : memref<2x32x128xf32, #tpu.memory_space<vmem>>, vector<1x1x128xf32>
    %269 = vector.shape_cast %268 : vector<1x1x128xf32> to vector<1x128xf32>
    %270 = vector.broadcast %269 : vector<1x128xf32> to vector<66x128xf32>
    %271 = arith.subf %266, %270 : vector<66x128xf32>
    %272 = math.absf %271 : vector<66x128xf32>
    %273 = arith.addf %264, %272 : vector<66x128xf32>
    %c9_128 = arith.constant 9 : index
    %c0_129 = arith.constant 0 : index
    %c0_130 = arith.constant 0 : index
    %274 = vector.load %arg2[%c9_128, %c0_129, %c0_130] : memref<21x66x128xf32, #tpu.memory_space<vmem>>, vector<1x66x128xf32>
    %275 = vector.shape_cast %274 : vector<1x66x128xf32> to vector<66x128xf32>
    %276 = arith.index_cast %c1_i32 : i32 to index
    %c14_131 = arith.constant 14 : index
    %c0_132 = arith.constant 0 : index
    %277 = vector.load %arg1[%276, %c14_131, %c0_132] : memref<2x32x128xf32, #tpu.memory_space<vmem>>, vector<1x1x128xf32>
    %278 = vector.shape_cast %277 : vector<1x1x128xf32> to vector<1x128xf32>
    %279 = vector.broadcast %278 : vector<1x128xf32> to vector<66x128xf32>
    %280 = arith.subf %275, %279 : vector<66x128xf32>
    %281 = math.absf %280 : vector<66x128xf32>
    %282 = arith.addf %273, %281 : vector<66x128xf32>
    %c10_133 = arith.constant 10 : index
    %c0_134 = arith.constant 0 : index
    %c0_135 = arith.constant 0 : index
    %283 = vector.load %arg2[%c10_133, %c0_134, %c0_135] : memref<21x66x128xf32, #tpu.memory_space<vmem>>, vector<1x66x128xf32>
    %284 = vector.shape_cast %283 : vector<1x66x128xf32> to vector<66x128xf32>
    %285 = arith.index_cast %c1_i32 : i32 to index
    %c15_136 = arith.constant 15 : index
    %c0_137 = arith.constant 0 : index
    %286 = vector.load %arg1[%285, %c15_136, %c0_137] : memref<2x32x128xf32, #tpu.memory_space<vmem>>, vector<1x1x128xf32>
    %287 = vector.shape_cast %286 : vector<1x1x128xf32> to vector<1x128xf32>
    %288 = vector.broadcast %287 : vector<1x128xf32> to vector<66x128xf32>
    %289 = arith.subf %284, %288 : vector<66x128xf32>
    %290 = math.absf %289 : vector<66x128xf32>
    %291 = arith.addf %282, %290 : vector<66x128xf32>
    %c11_138 = arith.constant 11 : index
    %c0_139 = arith.constant 0 : index
    %c0_140 = arith.constant 0 : index
    %292 = vector.load %arg2[%c11_138, %c0_139, %c0_140] : memref<21x66x128xf32, #tpu.memory_space<vmem>>, vector<1x66x128xf32>
    %293 = vector.shape_cast %292 : vector<1x66x128xf32> to vector<66x128xf32>
    %294 = arith.index_cast %c1_i32 : i32 to index
    %c16_141 = arith.constant 16 : index
    %c0_142 = arith.constant 0 : index
    %295 = vector.load %arg1[%294, %c16_141, %c0_142] : memref<2x32x128xf32, #tpu.memory_space<vmem>>, vector<1x1x128xf32>
    %296 = vector.shape_cast %295 : vector<1x1x128xf32> to vector<1x128xf32>
    %297 = vector.broadcast %296 : vector<1x128xf32> to vector<66x128xf32>
    %298 = arith.subf %293, %297 : vector<66x128xf32>
    %299 = math.absf %298 : vector<66x128xf32>
    %300 = arith.addf %291, %299 : vector<66x128xf32>
    %c12_143 = arith.constant 12 : index
    %c0_144 = arith.constant 0 : index
    %c0_145 = arith.constant 0 : index
    %301 = vector.load %arg2[%c12_143, %c0_144, %c0_145] : memref<21x66x128xf32, #tpu.memory_space<vmem>>, vector<1x66x128xf32>
    %302 = vector.shape_cast %301 : vector<1x66x128xf32> to vector<66x128xf32>
    %303 = arith.index_cast %c1_i32 : i32 to index
    %c17_146 = arith.constant 17 : index
    %c0_147 = arith.constant 0 : index
    %304 = vector.load %arg1[%303, %c17_146, %c0_147] : memref<2x32x128xf32, #tpu.memory_space<vmem>>, vector<1x1x128xf32>
    %305 = vector.shape_cast %304 : vector<1x1x128xf32> to vector<1x128xf32>
    %306 = vector.broadcast %305 : vector<1x128xf32> to vector<66x128xf32>
    %307 = arith.subf %302, %306 : vector<66x128xf32>
    %308 = math.absf %307 : vector<66x128xf32>
    %309 = arith.addf %300, %308 : vector<66x128xf32>
    %c13_148 = arith.constant 13 : index
    %c0_149 = arith.constant 0 : index
    %c0_150 = arith.constant 0 : index
    %310 = vector.load %arg2[%c13_148, %c0_149, %c0_150] : memref<21x66x128xf32, #tpu.memory_space<vmem>>, vector<1x66x128xf32>
    %311 = vector.shape_cast %310 : vector<1x66x128xf32> to vector<66x128xf32>
    %312 = arith.index_cast %c1_i32 : i32 to index
    %c18_151 = arith.constant 18 : index
    %c0_152 = arith.constant 0 : index
    %313 = vector.load %arg1[%312, %c18_151, %c0_152] : memref<2x32x128xf32, #tpu.memory_space<vmem>>, vector<1x1x128xf32>
    %314 = vector.shape_cast %313 : vector<1x1x128xf32> to vector<1x128xf32>
    %315 = vector.broadcast %314 : vector<1x128xf32> to vector<66x128xf32>
    %316 = arith.subf %311, %315 : vector<66x128xf32>
    %317 = math.absf %316 : vector<66x128xf32>
    %318 = arith.addf %309, %317 : vector<66x128xf32>
    %c14_153 = arith.constant 14 : index
    %c0_154 = arith.constant 0 : index
    %c0_155 = arith.constant 0 : index
    %319 = vector.load %arg2[%c14_153, %c0_154, %c0_155] : memref<21x66x128xf32, #tpu.memory_space<vmem>>, vector<1x66x128xf32>
    %320 = vector.shape_cast %319 : vector<1x66x128xf32> to vector<66x128xf32>
    %321 = arith.index_cast %c1_i32 : i32 to index
    %c19_156 = arith.constant 19 : index
    %c0_157 = arith.constant 0 : index
    %322 = vector.load %arg1[%321, %c19_156, %c0_157] : memref<2x32x128xf32, #tpu.memory_space<vmem>>, vector<1x1x128xf32>
    %323 = vector.shape_cast %322 : vector<1x1x128xf32> to vector<1x128xf32>
    %324 = vector.broadcast %323 : vector<1x128xf32> to vector<66x128xf32>
    %325 = arith.subf %320, %324 : vector<66x128xf32>
    %326 = math.absf %325 : vector<66x128xf32>
    %327 = arith.addf %318, %326 : vector<66x128xf32>
    %c15_158 = arith.constant 15 : index
    %c0_159 = arith.constant 0 : index
    %c0_160 = arith.constant 0 : index
    %328 = vector.load %arg2[%c15_158, %c0_159, %c0_160] : memref<21x66x128xf32, #tpu.memory_space<vmem>>, vector<1x66x128xf32>
    %329 = vector.shape_cast %328 : vector<1x66x128xf32> to vector<66x128xf32>
    %330 = arith.index_cast %c1_i32 : i32 to index
    %c20_161 = arith.constant 20 : index
    %c0_162 = arith.constant 0 : index
    %331 = vector.load %arg1[%330, %c20_161, %c0_162] : memref<2x32x128xf32, #tpu.memory_space<vmem>>, vector<1x1x128xf32>
    %332 = vector.shape_cast %331 : vector<1x1x128xf32> to vector<1x128xf32>
    %333 = vector.broadcast %332 : vector<1x128xf32> to vector<66x128xf32>
    %334 = arith.subf %329, %333 : vector<66x128xf32>
    %335 = math.absf %334 : vector<66x128xf32>
    %336 = arith.addf %327, %335 : vector<66x128xf32>
    %c16_163 = arith.constant 16 : index
    %c0_164 = arith.constant 0 : index
    %c0_165 = arith.constant 0 : index
    %337 = vector.load %arg2[%c16_163, %c0_164, %c0_165] : memref<21x66x128xf32, #tpu.memory_space<vmem>>, vector<1x66x128xf32>
    %338 = vector.shape_cast %337 : vector<1x66x128xf32> to vector<66x128xf32>
    %339 = arith.index_cast %c1_i32 : i32 to index
    %c21_166 = arith.constant 21 : index
    %c0_167 = arith.constant 0 : index
    %340 = vector.load %arg1[%339, %c21_166, %c0_167] : memref<2x32x128xf32, #tpu.memory_space<vmem>>, vector<1x1x128xf32>
    %341 = vector.shape_cast %340 : vector<1x1x128xf32> to vector<1x128xf32>
    %342 = vector.broadcast %341 : vector<1x128xf32> to vector<66x128xf32>
    %343 = arith.subf %338, %342 : vector<66x128xf32>
    %344 = math.absf %343 : vector<66x128xf32>
    %345 = arith.addf %336, %344 : vector<66x128xf32>
    %c17_168 = arith.constant 17 : index
    %c0_169 = arith.constant 0 : index
    %c0_170 = arith.constant 0 : index
    %346 = vector.load %arg2[%c17_168, %c0_169, %c0_170] : memref<21x66x128xf32, #tpu.memory_space<vmem>>, vector<1x66x128xf32>
    %347 = vector.shape_cast %346 : vector<1x66x128xf32> to vector<66x128xf32>
    %348 = arith.index_cast %c1_i32 : i32 to index
    %c22_171 = arith.constant 22 : index
    %c0_172 = arith.constant 0 : index
    %349 = vector.load %arg1[%348, %c22_171, %c0_172] : memref<2x32x128xf32, #tpu.memory_space<vmem>>, vector<1x1x128xf32>
    %350 = vector.shape_cast %349 : vector<1x1x128xf32> to vector<1x128xf32>
    %351 = vector.broadcast %350 : vector<1x128xf32> to vector<66x128xf32>
    %352 = arith.subf %347, %351 : vector<66x128xf32>
    %353 = math.absf %352 : vector<66x128xf32>
    %354 = arith.addf %345, %353 : vector<66x128xf32>
    %c18_173 = arith.constant 18 : index
    %c0_174 = arith.constant 0 : index
    %c0_175 = arith.constant 0 : index
    %355 = vector.load %arg2[%c18_173, %c0_174, %c0_175] : memref<21x66x128xf32, #tpu.memory_space<vmem>>, vector<1x66x128xf32>
    %356 = vector.shape_cast %355 : vector<1x66x128xf32> to vector<66x128xf32>
    %357 = arith.index_cast %c1_i32 : i32 to index
    %c23_176 = arith.constant 23 : index
    %c0_177 = arith.constant 0 : index
    %358 = vector.load %arg1[%357, %c23_176, %c0_177] : memref<2x32x128xf32, #tpu.memory_space<vmem>>, vector<1x1x128xf32>
    %359 = vector.shape_cast %358 : vector<1x1x128xf32> to vector<1x128xf32>
    %360 = vector.broadcast %359 : vector<1x128xf32> to vector<66x128xf32>
    %361 = arith.subf %356, %360 : vector<66x128xf32>
    %362 = math.absf %361 : vector<66x128xf32>
    %363 = arith.addf %354, %362 : vector<66x128xf32>
    %c19_178 = arith.constant 19 : index
    %c0_179 = arith.constant 0 : index
    %c0_180 = arith.constant 0 : index
    %364 = vector.load %arg2[%c19_178, %c0_179, %c0_180] : memref<21x66x128xf32, #tpu.memory_space<vmem>>, vector<1x66x128xf32>
    %365 = vector.shape_cast %364 : vector<1x66x128xf32> to vector<66x128xf32>
    %366 = arith.index_cast %c1_i32 : i32 to index
    %c24_181 = arith.constant 24 : index
    %c0_182 = arith.constant 0 : index
    %367 = vector.load %arg1[%366, %c24_181, %c0_182] : memref<2x32x128xf32, #tpu.memory_space<vmem>>, vector<1x1x128xf32>
    %368 = vector.shape_cast %367 : vector<1x1x128xf32> to vector<1x128xf32>
    %369 = vector.broadcast %368 : vector<1x128xf32> to vector<66x128xf32>
    %370 = arith.subf %365, %369 : vector<66x128xf32>
    %371 = math.absf %370 : vector<66x128xf32>
    %372 = arith.addf %363, %371 : vector<66x128xf32>
    %c20_183 = arith.constant 20 : index
    %c0_184 = arith.constant 0 : index
    %c0_185 = arith.constant 0 : index
    %373 = vector.load %arg2[%c20_183, %c0_184, %c0_185] : memref<21x66x128xf32, #tpu.memory_space<vmem>>, vector<1x66x128xf32>
    %374 = vector.shape_cast %373 : vector<1x66x128xf32> to vector<66x128xf32>
    %375 = arith.index_cast %c1_i32 : i32 to index
    %c25_186 = arith.constant 25 : index
    %c0_187 = arith.constant 0 : index
    %376 = vector.load %arg1[%375, %c25_186, %c0_187] : memref<2x32x128xf32, #tpu.memory_space<vmem>>, vector<1x1x128xf32>
    %377 = vector.shape_cast %376 : vector<1x1x128xf32> to vector<1x128xf32>
    %378 = vector.broadcast %377 : vector<1x128xf32> to vector<66x128xf32>
    %379 = arith.subf %374, %378 : vector<66x128xf32>
    %380 = math.absf %379 : vector<66x128xf32>
    %381 = arith.addf %372, %380 : vector<66x128xf32>
    %c0_188 = arith.constant 0 : index
    %c0_189 = arith.constant 0 : index
    %382 = vector.load %arg3[%c0_188, %c0_189] : memref<128x8xf32, #tpu.memory_space<vmem>>, vector<128x8xf32>
    %cst_190 = arith.constant dense<0.000000e+00> : vector<66x8xf32>
    %383 = tpu.matmul %381, %382, %cst_190 {dimension_numbers = #tpu.dot_dimension_numbers<[1], [0], [0], [1], [0, 0, 1, 1], [], []>} : vector<66x128xf32>, vector<128x8xf32>, vector<66x8xf32> -> vector<66x8xf32>
    %384 = arith.index_cast %c1_i32 : i32 to index
    %c0_191 = arith.constant 0 : index
    %c0_192 = arith.constant 0 : index
    %385 = vector.load %arg4[%384, %c0_191, %c0_192] : memref<2x66x8xf32, #tpu.memory_space<vmem>>, vector<1x66x8xf32>
    %386 = vector.shape_cast %385 : vector<1x66x8xf32> to vector<66x8xf32>
    %387 = vector.shape_cast %383 : vector<66x8xf32> to vector<1x66x8xf32>
    tpu.vector_store %arg4[%384, %c0_191, %c0_192], %387 {strides = array<i32>} : memref<2x66x8xf32, #tpu.memory_space<vmem>>, vector<1x66x8xf32>,
    %c2_i32 = arith.constant 2 : i32
    return
  }
  func.func @transform_0(%arg0: i32) -> (i32, i32, i32) {
    %c0_i32 = arith.constant 0 : i32
    %c0_i32_0 = arith.constant 0 : i32
    %c0_i32_1 = arith.constant 0 : i32
    return %arg0, %c0_i32, %c0_i32_0 : i32, i32, i32
  }
  func.func @transform_1(%arg0: i32) -> (i32, i32, i32) {
    %c0_i32 = arith.constant 0 : i32
    %c0_i32_0 = arith.constant 0 : i32
    %c0_i32_1 = arith.constant 0 : i32
    %c0_i32_2 = arith.constant 0 : i32
    return %c0_i32, %c0_i32_0, %c0_i32_1 : i32, i32, i32
  }
  func.func @transform_2(%arg0: i32) -> (i32, i32) {
    %c0_i32 = arith.constant 0 : i32
    %c0_i32_0 = arith.constant 0 : i32
    %c0_i32_1 = arith.constant 0 : i32
    return %c0_i32, %c0_i32_0 : i32, i32
  }
  func.func @transform_3(%arg0: i32) -> (i32, i32, i32) {
    %c0_i32 = arith.constant 0 : i32
    %c0_i32_0 = arith.constant 0 : i32
    %c0_i32_1 = arith.constant 0 : i32
    return %arg0, %c0_i32, %c0_i32_0 : i32, i32, i32
  }
}

</mosaic_0001>

<llo_original>
// kernel: tpu_custom_call.1
$region0: #{tpu_custom_call.1}
  #allocation0 [shape = 'u32[]', space=smem, size = 0x4, offset = 0x4, fixed_abs, tag = 'smem constant byte address 0x4 - core index']
  #allocation1 [shape = 'u32[72,128]{1,0:T(1,128)}', space=vmem, size = 0x9000, scoped, tag = 'internal scratch']
  %s0 = inlined_call_operand.vmem [shape: f32[2,32,128], index: 0, kind: input, shape index: {}]
  %s1 = inlined_call_operand.hbm [shape: f32[21,66,128], index: 1, kind: input, shape index: {}]
  %s2 = inlined_call_operand.vmem [shape: f32[128,8], index: 2, kind: input, shape index: {}]
  %s3 = inlined_call_operand.vmem [shape: f32[2,66,8], index: 3, kind: output, shape index: {}]
  %s4 = sld [smem:[#allocation0]]
  $region26: #{tpu_custom_call.1} parent=0
    _
  %s6 = ssub.s32 1, %s4
  %s7 = scalar_select 0, %s6, %s4
  $region1: #{tpu_custom_call.1} parent=0
    #allocation2 [shape = 'u8[774144]{0}', space=vmem, size = 0xbd000, scoped, tag = 'input window, operand 1, single buffered']
    #allocation3 [shape = 's32[1]{0}', space=sflag, size = 0x4, scoped, tag = 'scoped memory for tpu_custom_call.1']
    %8 = vsyncpa [#allocation3], 0
    // Predicated region
    $region2: #{tpu_custom_call.1} parent=1 // pred_check
      _
    $region3: #{tpu_custom_call.1} parent=1 // pred_check_branch
      %10 = sbr.rel (0) target = $region5
    $region4: #{tpu_custom_call.1} parent=1 // pred_region
      _
    $region5: #{tpu_custom_call.1} parent=1 // pred_fallthru
      _
    // Predicated region
    $region6: #{tpu_custom_call.1} parent=1 // pred_check
      _
    $region7: #{tpu_custom_call.1} parent=1 // pred_check_branch
      %12 = sbr.rel (0) target = $region9
    $region8: #{tpu_custom_call.1} parent=1 // pred_region
      %14 = vsyncadd [#allocation3], 0
      %s15 = sshll.u32 %s1, 4
      %s16 = int_to_ptr.hbm [resolvable:$true] %s15
      %s17 = sshll.u32 [#allocation2], 4
      %s18 = int_to_ptr.vmem [resolvable:$true] %s17
      %23 = dma.hbm_to_vmem [thread:$0]  %s16, 24192, %s18, [#allocation3], 128, 128, 8
    $region9: #{tpu_custom_call.1} parent=1 // pred_fallthru
      _
    // Predicated region
    $region10: #{tpu_custom_call.1} parent=1 // pred_check
      _
    $region11: #{tpu_custom_call.1} parent=1 // pred_check_branch
      %25 = sbr.rel (0) target = $region13
    $region12: #{tpu_custom_call.1} parent=1 // pred_region
      _
    $region13: #{tpu_custom_call.1} parent=1 // pred_fallthru
      _
    // Predicated region
    $region14: #{tpu_custom_call.1} parent=1 // pred_check
      _
    $region15: #{tpu_custom_call.1} parent=1 // pred_check_branch
      %27 = sbr.rel (0) target = $region17
    $region16: #{tpu_custom_call.1} parent=1 // pred_region
      %29 = dma.done [#allocation3], 24192
    $region17: #{tpu_custom_call.1} parent=1 // pred_fallthru
      _
    %v30 = vld [vmem:[#allocation2] sm:$0xff]
    %v31 = vld [vmem:[#allocation2 + $0x8] sm:$0xff]
    %v32 = vld [vmem:[#allocation2 + $0x10] sm:$0xff]
    %v33 = vld [vmem:[#allocation2 + $0x18] sm:$0xff]
    %v34 = vld [vmem:[#allocation2 + $0x20] sm:$0xff]
    %v35 = vld [vmem:[#allocation2 + $0x28] sm:$0xff]
    %v36 = vld [vmem:[#allocation2 + $0x30] sm:$0xff]
    %v37 = vld [vmem:[#allocation2 + $0x38] sm:$0xff]
    %v38 = vld [vmem:[#allocation2 + $0x40] sm:$0x3]
    %v39 = vld [vmem:[%s0 + $0x5] sm:$0x1]
    %v40 = vperm.slane %v39, 0
    %v41 = vsub.f32 %v30, %v40
    %v42 = vsub.f32 %v31, %v40
    %v43 = vsub.f32 %v32, %v40
    %v44 = vsub.f32 %v33, %v40
    %v45 = vsub.f32 %v34, %v40
    %v46 = vsub.f32 %v35, %v40
    %v47 = vsub.f32 %v36, %v40
    %v48 = vsub.f32 %v37, %v40
    %v49 = vsub.f32 %v38, %v40
    %v50 = vand.u32 2147483647, %v41
    %v51 = vand.u32 2147483647, %v42
    %v52 = vand.u32 2147483647, %v43
    %v53 = vand.u32 2147483647, %v44
    %v54 = vand.u32 2147483647, %v45
    %v55 = vand.u32 2147483647, %v46
    %v56 = vand.u32 2147483647, %v47
    %v57 = vand.u32 2147483647, %v48
    %v58 = vand.u32 2147483647, %v49
    %s59 = scalar_lea.vmem [#allocation2], 72
    %v60 = vld [vmem:[%s59] sm:$0xff]
    %v61 = vld [vmem:[%s59 + $0x8] sm:$0xff]
    %v62 = vld [vmem:[%s59 + $0x10] sm:$0xff]
    %v63 = vld [vmem:[%s59 + $0x18] sm:$0xff]
    %v64 = vld [vmem:[%s59 + $0x20] sm:$0xff]
    %v65 = vld [vmem:[%s59 + $0x28] sm:$0xff]
    %v66 = vld [vmem:[%s59 + $0x30] sm:$0xff]
    %v67 = vld [vmem:[%s59 + $0x38] sm:$0xff]
    %v68 = vld [vmem:[%s59 + $0x40] sm:$0x3]
    %v69 = vld [vmem:[%s0 + $0x6] sm:$0x1]
    %v70 = vperm.slane %v69, 0
    %v71 = vsub.f32 %v60, %v70
    %v72 = vsub.f32 %v61, %v70
    %v73 = vsub.f32 %v62, %v70
    %v74 = vsub.f32 %v63, %v70
    %v75 = vsub.f32 %v64, %v70
    %v76 = vsub.f32 %v65, %v70
    %v77 = vsub.f32 %v66, %v70
    %v78 = vsub.f32 %v67, %v70
    %v79 = vsub.f32 %v68, %v70
    %v80 = vand.u32 2147483647, %v71
    %v81 = vand.u32 2147483647, %v72
    %v82 = vand.u32 2147483647, %v73
    %v83 = vand.u32 2147483647, %v74
    %v84 = vand.u32 2147483647, %v75
    %v85 = vand.u32 2147483647, %v76
    %v86 = vand.u32 2147483647, %v77
    %v87 = vand.u32 2147483647, %v78
    %v88 = vand.u32 2147483647, %v79
    %v89 = vadd.f32 %v50, %v80
    %v90 = vadd.f32 %v51, %v81
    %v91 = vadd.f32 %v52, %v82
    %v92 = vadd.f32 %v53, %v83
    %v93 = vadd.f32 %v54, %v84
    %v94 = vadd.f32 %v55, %v85
    %v95 = vadd.f32 %v56, %v86
    %v96 = vadd.f32 %v57, %v87
    %v97 = vadd.f32 %v58, %v88
    %s98 = scalar_lea.vmem [#allocation2], 144
    %v99 = vld [vmem:[%s98] sm:$0xff]
    %v100 = vld [vmem:[%s98 + $0x8] sm:$0xff]
    %v101 = vld [vmem:[%s98 + $0x10] sm:$0xff]
    %v102 = vld [vmem:[%s98 + $0x18] sm:$0xff]
    %v103 = vld [vmem:[%s98 + $0x20] sm:$0xff]
    %v104 = vld [vmem:[%s98 + $0x28] sm:$0xff]
    %v105 = vld [vmem:[%s98 + $0x30] sm:$0xff]
    %v106 = vld [vmem:[%s98 + $0x38] sm:$0xff]
    %v107 = vld [vmem:[%s98 + $0x40] sm:$0x3]
    %v108 = vld [vmem:[%s0 + $0x7] sm:$0x1]
    %v109 = vperm.slane %v108, 0
    %v110 = vsub.f32 %v99, %v109
    %v111 = vsub.f32 %v100, %v109
    %v112 = vsub.f32 %v101, %v109
    %v113 = vsub.f32 %v102, %v109
    %v114 = vsub.f32 %v103, %v109
    %v115 = vsub.f32 %v104, %v109
    %v116 = vsub.f32 %v105, %v109
    %v117 = vsub.f32 %v106, %v109
    %v118 = vsub.f32 %v107, %v109
    %v119 = vand.u32 2147483647, %v110
    %v120 = vand.u32 2147483647, %v111
    %v121 = vand.u32 2147483647, %v112
    %v122 = vand.u32 2147483647, %v113
    %v123 = vand.u32 2147483647, %v114
    %v124 = vand.u32 2147483647, %v115
    %v125 = vand.u32 2147483647, %v116
    %v126 = vand.u32 2147483647, %v117
    %v127 = vand.u32 2147483647, %v118
    %v128 = vadd.f32 %v89, %v119
    %v129 = vadd.f32 %v90, %v120
    %v130 = vadd.f32 %v91, %v121
    %v131 = vadd.f32 %v92, %v122
    %v132 = vadd.f32 %v93, %v123
    %v133 = vadd.f32 %v94, %v124
    %v134 = vadd.f32 %v95, %v125
    %v135 = vadd.f32 %v96, %v126
    %v136 = vadd.f32 %v97, %v127
    %s137 = scalar_lea.vmem [#allocation2], 216
    %v138 = vld [vmem:[%s137] sm:$0xff]
    %v139 = vld [vmem:[%s137 + $0x8] sm:$0xff]
    %v140 = vld [vmem:[%s137 + $0x10] sm:$0xff]
    %v141 = vld [vmem:[%s137 + $0x18] sm:$0xff]
    %v142 = vld [vmem:[%s137 + $0x20] sm:$0xff]
    %v143 = vld [vmem:[%s137 + $0x28] sm:$0xff]
    %v144 = vld [vmem:[%s137 + $0x30] sm:$0xff]
    %v145 = vld [vmem:[%s137 + $0x38] sm:$0xff]
    %v146 = vld [vmem:[%s137 + $0x40] sm:$0x3]
    %v147 = vld [vmem:[%s0 + $0x8] sm:$0x1]
    %v148 = vperm.slane %v147, 0
    %v149 = vsub.f32 %v138, %v148
    %v150 = vsub.f32 %v139, %v148
    %v151 = vsub.f32 %v140, %v148
    %v152 = vsub.f32 %v141, %v148
    %v153 = vsub.f32 %v142, %v148
    %v154 = vsub.f32 %v143, %v148
    %v155 = vsub.f32 %v144, %v148
    %v156 = vsub.f32 %v145, %v148
    %v157 = vsub.f32 %v146, %v148
    %v158 = vand.u32 2147483647, %v149
    %v159 = vand.u32 2147483647, %v150
    %v160 = vand.u32 2147483647, %v151
    %v161 = vand.u32 2147483647, %v152
    %v162 = vand.u32 2147483647, %v153
    %v163 = vand.u32 2147483647, %v154
    %v164 = vand.u32 2147483647, %v155
    %v165 = vand.u32 2147483647, %v156
    %v166 = vand.u32 2147483647, %v157
    %v167 = vadd.f32 %v128, %v158
    %v168 = vadd.f32 %v129, %v159
    %v169 = vadd.f32 %v130, %v160
    %v170 = vadd.f32 %v131, %v161
    %v171 = vadd.f32 %v132, %v162
    %v172 = vadd.f32 %v133, %v163
    %v173 = vadd.f32 %v134, %v164
    %v174 = vadd.f32 %v135, %v165
    %v175 = vadd.f32 %v136, %v166
    %s176 = scalar_lea.vmem [#allocation2], 288
    %v177 = vld [vmem:[%s176] sm:$0xff]
    %v178 = vld [vmem:[%s176 + $0x8] sm:$0xff]
    %v179 = vld [vmem:[%s176 + $0x10] sm:$0xff]
    %v180 = vld [vmem:[%s176 + $0x18] sm:$0xff]
    %v181 = vld [vmem:[%s176 + $0x20] sm:$0xff]
    %v182 = vld [vmem:[%s176 + $0x28] sm:$0xff]
    %v183 = vld [vmem:[%s176 + $0x30] sm:$0xff]
    %v184 = vld [vmem:[%s176 + $0x38] sm:$0xff]
    %v185 = vld [vmem:[%s176 + $0x40] sm:$0x3]
    %v186 = vld [vmem:[%s0 + $0x9] sm:$0x1]
    %v187 = vperm.slane %v186, 0
    %v188 = vsub.f32 %v177, %v187
    %v189 = vsub.f32 %v178, %v187
    %v190 = vsub.f32 %v179, %v187
    %v191 = vsub.f32 %v180, %v187
    %v192 = vsub.f32 %v181, %v187
    %v193 = vsub.f32 %v182, %v187
    %v194 = vsub.f32 %v183, %v187
    %v195 = vsub.f32 %v184, %v187
    %v196 = vsub.f32 %v185, %v187
    %v197 = vand.u32 2147483647, %v188
    %v198 = vand.u32 2147483647, %v189
    %v199 = vand.u32 2147483647, %v190
    %v200 = vand.u32 2147483647, %v191
    %v201 = vand.u32 2147483647, %v192
    %v202 = vand.u32 2147483647, %v193
    %v203 = vand.u32 2147483647, %v194
    %v204 = vand.u32 2147483647, %v195
    %v205 = vand.u32 2147483647, %v196
    %v206 = vadd.f32 %v167, %v197
    %v207 = vadd.f32 %v168, %v198
    %v208 = vadd.f32 %v169, %v199
    %v209 = vadd.f32 %v170, %v200
    %v210 = vadd.f32 %v171, %v201
    %v211 = vadd.f32 %v172, %v202
    %v212 = vadd.f32 %v173, %v203
    %v213 = vadd.f32 %v174, %v204
    %v214 = vadd.f32 %v175, %v205
    %s215 = scalar_lea.vmem [#allocation2], 360
    %v216 = vld [vmem:[%s215] sm:$0xff]
    %v217 = vld [vmem:[%s215 + $0x8] sm:$0xff]
    %v218 = vld [vmem:[%s215 + $0x10] sm:$0xff]
    %v219 = vld [vmem:[%s215 + $0x18] sm:$0xff]
    %v220 = vld [vmem:[%s215 + $0x20] sm:$0xff]
    %v221 = vld [vmem:[%s215 + $0x28] sm:$0xff]
    %v222 = vld [vmem:[%s215 + $0x30] sm:$0xff]
    %v223 = vld [vmem:[%s215 + $0x38] sm:$0xff]
    %v224 = vld [vmem:[%s215 + $0x40] sm:$0x3]
    %v225 = vld [vmem:[%s0 + $0xa] sm:$0x1]
    %v226 = vperm.slane %v225, 0
    %v227 = vsub.f32 %v216, %v226
    %v228 = vsub.f32 %v217, %v226
    %v229 = vsub.f32 %v218, %v226
    %v230 = vsub.f32 %v219, %v226
    %v231 = vsub.f32 %v220, %v226
    %v232 = vsub.f32 %v221, %v226
    %v233 = vsub.f32 %v222, %v226
    %v234 = vsub.f32 %v223, %v226
    %v235 = vsub.f32 %v224, %v226
    %v236 = vand.u32 2147483647, %v227
    %v237 = vand.u32 2147483647, %v228
    %v238 = vand.u32 2147483647, %v229
    %v239 = vand.u32 2147483647, %v230
    %v240 = vand.u32 2147483647, %v231
    %v241 = vand.u32 2147483647, %v232
    %v242 = vand.u32 2147483647, %v233
    %v243 = vand.u32 2147483647, %v234
    %v244 = vand.u32 2147483647, %v235
    %v245 = vadd.f32 %v206, %v236
    %v246 = vadd.f32 %v207, %v237
    %v247 = vadd.f32 %v208, %v238
    %v248 = vadd.f32 %v209, %v239
    %v249 = vadd.f32 %v210, %v240
    %v250 = vadd.f32 %v211, %v241
    %v251 = vadd.f32 %v212, %v242
    %v252 = vadd.f32 %v213, %v243
    %v253 = vadd.f32 %v214, %v244
    %s254 = scalar_lea.vmem [#allocation2], 432
    %v255 = vld [vmem:[%s254] sm:$0xff]
    %v256 = vld [vmem:[%s254 + $0x8] sm:$0xff]
    %v257 = vld [vmem:[%s254 + $0x10] sm:$0xff]
    %v258 = vld [vmem:[%s254 + $0x18] sm:$0xff]
    %v259 = vld [vmem:[%s254 + $0x20] sm:$0xff]
    %v260 = vld [vmem:[%s254 + $0x28] sm:$0xff]
    %v261 = vld [vmem:[%s254 + $0x30] sm:$0xff]
    %v262 = vld [vmem:[%s254 + $0x38] sm:$0xff]
    %v263 = vld [vmem:[%s254 + $0x40] sm:$0x3]
    %v264 = vld [vmem:[%s0 + $0xb] sm:$0x1]
    %v265 = vperm.slane %v264, 0
    %v266 = vsub.f32 %v255, %v265
    %v267 = vsub.f32 %v256, %v265
    %v268 = vsub.f32 %v257, %v265
    %v269 = vsub.f32 %v258, %v265
    %v270 = vsub.f32 %v259, %v265
    %v271 = vsub.f32 %v260, %v265
    %v272 = vsub.f32 %v261, %v265
    %v273 = vsub.f32 %v262, %v265
    %v274 = vsub.f32 %v263, %v265
    %v275 = vand.u32 2147483647, %v266
    %v276 = vand.u32 2147483647, %v267
    %v277 = vand.u32 2147483647, %v268
    %v278 = vand.u32 2147483647, %v269
    %v279 = vand.u32 2147483647, %v270
    %v280 = vand.u32 2147483647, %v271
    %v281 = vand.u32 2147483647, %v272
    %v282 = vand.u32 2147483647, %v273
    %v283 = vand.u32 2147483647, %v274
    %v284 = vadd.f32 %v245, %v275
    %v285 = vadd.f32 %v246, %v276
    %v286 = vadd.f32 %v247, %v277
    %v287 = vadd.f32 %v248, %v278
    %v288 = vadd.f32 %v249, %v279
    %v289 = vadd.f32 %v250, %v280
    %v290 = vadd.f32 %v251, %v281
    %v291 = vadd.f32 %v252, %v282
    %v292 = vadd.f32 %v253, %v283
    %s293 = scalar_lea.vmem [#allocation2], 504
    %v294 = vld [vmem:[%s293] sm:$0xff]
    %v295 = vld [vmem:[%s293 + $0x8] sm:$0xff]
    %v296 = vld [vmem:[%s293 + $0x10] sm:$0xff]
    %v297 = vld [vmem:[%s293 + $0x18] sm:$0xff]
    %v298 = vld [vmem:[%s293 + $0x20] sm:$0xff]
    %v299 = vld [vmem:[%s293 + $0x28] sm:$0xff]
    %v300 = vld [vmem:[%s293 + $0x30] sm:$0xff]
    %v301 = vld [vmem:[%s293 + $0x38] sm:$0xff]
    %v302 = vld [vmem:[%s293 + $0x40] sm:$0x3]
    %v303 = vld [vmem:[%s0 + $0xc] sm:$0x1]
    %v304 = vperm.slane %v303, 0
    %v305 = vsub.f32 %v294, %v304
    %v306 = vsub.f32 %v295, %v304
    %v307 = vsub.f32 %v296, %v304
    %v308 = vsub.f32 %v297, %v304
    %v309 = vsub.f32 %v298, %v304
    %v310 = vsub.f32 %v299, %v304
    %v311 = vsub.f32 %v300, %v304
    %v312 = vsub.f32 %v301, %v304
    %v313 = vsub.f32 %v302, %v304
    %v314 = vand.u32 2147483647, %v305
    %v315 = vand.u32 2147483647, %v306
    %v316 = vand.u32 2147483647, %v307
    %v317 = vand.u32 2147483647, %v308
    %v318 = vand.u32 2147483647, %v309
    %v319 = vand.u32 2147483647, %v310
    %v320 = vand.u32 2147483647, %v311
    %v321 = vand.u32 2147483647, %v312
    %v322 = vand.u32 2147483647, %v313
    %v323 = vadd.f32 %v284, %v314
    %v324 = vadd.f32 %v285, %v315
    %v325 = vadd.f32 %v286, %v316
    %v326 = vadd.f32 %v287, %v317
    %v327 = vadd.f32 %v288, %v318
    %v328 = vadd.f32 %v289, %v319
    %v329 = vadd.f32 %v290, %v320
    %v330 = vadd.f32 %v291, %v321
    %v331 = vadd.f32 %v292, %v322
    %s332 = scalar_lea.vmem [#allocation2], 576
    %v333 = vld [vmem:[%s332] sm:$0xff]
    %v334 = vld [vmem:[%s332 + $0x8] sm:$0xff]
    %v335 = vld [vmem:[%s332 + $0x10] sm:$0xff]
    %v336 = vld [vmem:[%s332 + $0x18] sm:$0xff]
    %v337 = vld [vmem:[%s332 + $0x20] sm:$0xff]
    %v338 = vld [vmem:[%s332 + $0x28] sm:$0xff]
    %v339 = vld [vmem:[%s332 + $0x30] sm:$0xff]
    %v340 = vld [vmem:[%s332 + $0x38] sm:$0xff]
    %v341 = vld [vmem:[%s332 + $0x40] sm:$0x3]
    %v342 = vld [vmem:[%s0 + $0xd] sm:$0x1]
    %v343 = vperm.slane %v342, 0
    %v344 = vsub.f32 %v333, %v343
    %v345 = vsub.f32 %v334, %v343
    %v346 = vsub.f32 %v335, %v343
    %v347 = vsub.f32 %v336, %v343
    %v348 = vsub.f32 %v337, %v343
    %v349 = vsub.f32 %v338, %v343
    %v350 = vsub.f32 %v339, %v343
    %v351 = vsub.f32 %v340, %v343
    %v352 = vsub.f32 %v341, %v343
    %v353 = vand.u32 2147483647, %v344
    %v354 = vand.u32 2147483647, %v345
    %v355 = vand.u32 2147483647, %v346
    %v356 = vand.u32 2147483647, %v347
    %v357 = vand.u32 2147483647, %v348
    %v358 = vand.u32 2147483647, %v349
    %v359 = vand.u32 2147483647, %v350
    %v360 = vand.u32 2147483647, %v351
    %v361 = vand.u32 2147483647, %v352
    %v362 = vadd.f32 %v323, %v353
    %v363 = vadd.f32 %v324, %v354
    %v364 = vadd.f32 %v325, %v355
    %v365 = vadd.f32 %v326, %v356
    %v366 = vadd.f32 %v327, %v357
    %v367 = vadd.f32 %v328, %v358
    %v368 = vadd.f32 %v329, %v359
    %v369 = vadd.f32 %v330, %v360
    %v370 = vadd.f32 %v331, %v361
    %s371 = scalar_lea.vmem [#allocation2], 648
    %v372 = vld [vmem:[%s371] sm:$0xff]
    %v373 = vld [vmem:[%s371 + $0x8] sm:$0xff]
    %v374 = vld [vmem:[%s371 + $0x10] sm:$0xff]
    %v375 = vld [vmem:[%s371 + $0x18] sm:$0xff]
    %v376 = vld [vmem:[%s371 + $0x20] sm:$0xff]
    %v377 = vld [vmem:[%s371 + $0x28] sm:$0xff]
    %v378 = vld [vmem:[%s371 + $0x30] sm:$0xff]
    %v379 = vld [vmem:[%s371 + $0x38] sm:$0xff]
    %v380 = vld [vmem:[%s371 + $0x40] sm:$0x3]
    %v381 = vld [vmem:[%s0 + $0xe] sm:$0x1]
    %v382 = vperm.slane %v381, 0
    %v383 = vsub.f32 %v372, %v382
    %v384 = vsub.f32 %v373, %v382
    %v385 = vsub.f32 %v374, %v382
    %v386 = vsub.f32 %v375, %v382
    %v387 = vsub.f32 %v376, %v382
    %v388 = vsub.f32 %v377, %v382
    %v389 = vsub.f32 %v378, %v382
    %v390 = vsub.f32 %v379, %v382
    %v391 = vsub.f32 %v380, %v382
    %v392 = vand.u32 2147483647, %v383
    %v393 = vand.u32 2147483647, %v384
    %v394 = vand.u32 2147483647, %v385
    %v395 = vand.u32 2147483647, %v386
    %v396 = vand.u32 2147483647, %v387
    %v397 = vand.u32 2147483647, %v388
    %v398 = vand.u32 2147483647, %v389
    %v399 = vand.u32 2147483647, %v390
    %v400 = vand.u32 2147483647, %v391
    %v401 = vadd.f32 %v362, %v392
    %v402 = vadd.f32 %v363, %v393
    %v403 = vadd.f32 %v364, %v394
    %v404 = vadd.f32 %v365, %v395
    %v405 = vadd.f32 %v366, %v396
    %v406 = vadd.f32 %v367, %v397
    %v407 = vadd.f32 %v368, %v398
    %v408 = vadd.f32 %v369, %v399
    %v409 = vadd.f32 %v370, %v400
    %s410 = scalar_lea.vmem [#allocation2], 720
    %v411 = vld [vmem:[%s410] sm:$0xff]
    %v412 = vld [vmem:[%s410 + $0x8] sm:$0xff]
    %v413 = vld [vmem:[%s410 + $0x10] sm:$0xff]
    %v414 = vld [vmem:[%s410 + $0x18] sm:$0xff]
    %v415 = vld [vmem:[%s410 + $0x20] sm:$0xff]
    %v416 = vld [vmem:[%s410 + $0x28] sm:$0xff]
    %v417 = vld [vmem:[%s410 + $0x30] sm:$0xff]
    %v418 = vld [vmem:[%s410 + $0x38] sm:$0xff]
    %v419 = vld [vmem:[%s410 + $0x40] sm:$0x3]
    %v420 = vld [vmem:[%s0 + $0xf] sm:$0x1]
    %v421 = vperm.slane %v420, 0
    %v422 = vsub.f32 %v411, %v421
    %v423 = vsub.f32 %v412, %v421
    %v424 = vsub.f32 %v413, %v421
    %v425 = vsub.f32 %v414, %v421
    %v426 = vsub.f32 %v415, %v421
    %v427 = vsub.f32 %v416, %v421
    %v428 = vsub.f32 %v417, %v421
    %v429 = vsub.f32 %v418, %v421
    %v430 = vsub.f32 %v419, %v421
    %v431 = vand.u32 2147483647, %v422
    %v432 = vand.u32 2147483647, %v423
    %v433 = vand.u32 2147483647, %v424
    %v434 = vand.u32 2147483647, %v425
    %v435 = vand.u32 2147483647, %v426
    %v436 = vand.u32 2147483647, %v427
    %v437 = vand.u32 2147483647, %v428
    %v438 = vand.u32 2147483647, %v429
    %v439 = vand.u32 2147483647, %v430
    %v440 = vadd.f32 %v401, %v431
    %v441 = vadd.f32 %v402, %v432
    %v442 = vadd.f32 %v403, %v433
    %v443 = vadd.f32 %v404, %v434
    %v444 = vadd.f32 %v405, %v435
    %v445 = vadd.f32 %v406, %v436
    %v446 = vadd.f32 %v407, %v437
    %v447 = vadd.f32 %v408, %v438
    %v448 = vadd.f32 %v409, %v439
    %s449 = scalar_lea.vmem [#allocation2], 792
    %v450 = vld [vmem:[%s449] sm:$0xff]
    %v451 = vld [vmem:[%s449 + $0x8] sm:$0xff]
    %v452 = vld [vmem:[%s449 + $0x10] sm:$0xff]
    %v453 = vld [vmem:[%s449 + $0x18] sm:$0xff]
    %v454 = vld [vmem:[%s449 + $0x20] sm:$0xff]
    %v455 = vld [vmem:[%s449 + $0x28] sm:$0xff]
    %v456 = vld [vmem:[%s449 + $0x30] sm:$0xff]
    %v457 = vld [vmem:[%s449 + $0x38] sm:$0xff]
    %v458 = vld [vmem:[%s449 + $0x40] sm:$0x3]
    %v459 = vld [vmem:[%s0 + $0x10] sm:$0x1]
    %v460 = vperm.slane %v459, 0
    %v461 = vsub.f32 %v450, %v460
    %v462 = vsub.f32 %v451, %v460
    %v463 = vsub.f32 %v452, %v460
    %v464 = vsub.f32 %v453, %v460
    %v465 = vsub.f32 %v454, %v460
    %v466 = vsub.f32 %v455, %v460
    %v467 = vsub.f32 %v456, %v460
    %v468 = vsub.f32 %v457, %v460
    %v469 = vsub.f32 %v458, %v460
    %v470 = vand.u32 2147483647, %v461
    %v471 = vand.u32 2147483647, %v462
    %v472 = vand.u32 2147483647, %v463
    %v473 = vand.u32 2147483647, %v464
    %v474 = vand.u32 2147483647, %v465
    %v475 = vand.u32 2147483647, %v466
    %v476 = vand.u32 2147483647, %v467
    %v477 = vand.u32 2147483647, %v468
    %v478 = vand.u32 2147483647, %v469
    %v479 = vadd.f32 %v440, %v470
    %v480 = vadd.f32 %v441, %v471
    %v481 = vadd.f32 %v442, %v472
    %v482 = vadd.f32 %v443, %v473
    %v483 = vadd.f32 %v444, %v474
    %v484 = vadd.f32 %v445, %v475
    %v485 = vadd.f32 %v446, %v476
    %v486 = vadd.f32 %v447, %v477
    %v487 = vadd.f32 %v448, %v478
    %s488 = scalar_lea.vmem [#allocation2], 864
    %v489 = vld [vmem:[%s488] sm:$0xff]
    %v490 = vld [vmem:[%s488 + $0x8] sm:$0xff]
    %v491 = vld [vmem:[%s488 + $0x10] sm:$0xff]
    %v492 = vld [vmem:[%s488 + $0x18] sm:$0xff]
    %v493 = vld [vmem:[%s488 + $0x20] sm:$0xff]
    %v494 = vld [vmem:[%s488 + $0x28] sm:$0xff]
    %v495 = vld [vmem:[%s488 + $0x30] sm:$0xff]
    %v496 = vld [vmem:[%s488 + $0x38] sm:$0xff]
    %v497 = vld [vmem:[%s488 + $0x40] sm:$0x3]
    %v498 = vld [vmem:[%s0 + $0x11] sm:$0x1]
    %v499 = vperm.slane %v498, 0
    %v500 = vsub.f32 %v489, %v499
    %v501 = vsub.f32 %v490, %v499
    %v502 = vsub.f32 %v491, %v499
    %v503 = vsub.f32 %v492, %v499
    %v504 = vsub.f32 %v493, %v499
    %v505 = vsub.f32 %v494, %v499
    %v506 = vsub.f32 %v495, %v499
    %v507 = vsub.f32 %v496, %v499
    %v508 = vsub.f32 %v497, %v499
    %v509 = vand.u32 2147483647, %v500
    %v510 = vand.u32 2147483647, %v501
    %v511 = vand.u32 2147483647, %v502
    %v512 = vand.u32 2147483647, %v503
    %v513 = vand.u32 2147483647, %v504
    %v514 = vand.u32 2147483647, %v505
    %v515 = vand.u32 2147483647, %v506
    %v516 = vand.u32 2147483647, %v507
    %v517 = vand.u32 2147483647, %v508
    %v518 = vadd.f32 %v479, %v509
    %v519 = vadd.f32 %v480, %v510
    %v520 = vadd.f32 %v481, %v511
    %v521 = vadd.f32 %v482, %v512
    %v522 = vadd.f32 %v483, %v513
    %v523 = vadd.f32 %v484, %v514
    %v524 = vadd.f32 %v485, %v515
    %v525 = vadd.f32 %v486, %v516
    %v526 = vadd.f32 %v487, %v517
    %s527 = scalar_lea.vmem [#allocation2], 936
    %v528 = vld [vmem:[%s527] sm:$0xff]
    %v529 = vld [vmem:[%s527 + $0x8] sm:$0xff]
    %v530 = vld [vmem:[%s527 + $0x10] sm:$0xff]
    %v531 = vld [vmem:[%s527 + $0x18] sm:$0xff]
    %v532 = vld [vmem:[%s527 + $0x20] sm:$0xff]
    %v533 = vld [vmem:[%s527 + $0x28] sm:$0xff]
    %v534 = vld [vmem:[%s527 + $0x30] sm:$0xff]
    %v535 = vld [vmem:[%s527 + $0x38] sm:$0xff]
    %v536 = vld [vmem:[%s527 + $0x40] sm:$0x3]
    %v537 = vld [vmem:[%s0 + $0x12] sm:$0x1]
    %v538 = vperm.slane %v537, 0
    %v539 = vsub.f32 %v528, %v538
    %v540 = vsub.f32 %v529, %v538
    %v541 = vsub.f32 %v530, %v538
    %v542 = vsub.f32 %v531, %v538
    %v543 = vsub.f32 %v532, %v538
    %v544 = vsub.f32 %v533, %v538
    %v545 = vsub.f32 %v534, %v538
    %v546 = vsub.f32 %v535, %v538
    %v547 = vsub.f32 %v536, %v538
    %v548 = vand.u32 2147483647, %v539
    %v549 = vand.u32 2147483647, %v540
    %v550 = vand.u32 2147483647, %v541
    %v551 = vand.u32 2147483647, %v542
    %v552 = vand.u32 2147483647, %v543
    %v553 = vand.u32 2147483647, %v544
    %v554 = vand.u32 2147483647, %v545
    %v555 = vand.u32 2147483647, %v546
    %v556 = vand.u32 2147483647, %v547
    %v557 = vadd.f32 %v518, %v548
    %v558 = vadd.f32 %v519, %v549
    %v559 = vadd.f32 %v520, %v550
    %v560 = vadd.f32 %v521, %v551
    %v561 = vadd.f32 %v522, %v552
    %v562 = vadd.f32 %v523, %v553
    %v563 = vadd.f32 %v524, %v554
    %v564 = vadd.f32 %v525, %v555
    %v565 = vadd.f32 %v526, %v556
    %s566 = scalar_lea.vmem [#allocation2], 1008
    %v567 = vld [vmem:[%s566] sm:$0xff]
    %v568 = vld [vmem:[%s566 + $0x8] sm:$0xff]
    %v569 = vld [vmem:[%s566 + $0x10] sm:$0xff]
    %v570 = vld [vmem:[%s566 + $0x18] sm:$0xff]
    %v571 = vld [vmem:[%s566 + $0x20] sm:$0xff]
    %v572 = vld [vmem:[%s566 + $0x28] sm:$0xff]
    %v573 = vld [vmem:[%s566 + $0x30] sm:$0xff]
    %v574 = vld [vmem:[%s566 + $0x38] sm:$0xff]
    %v575 = vld [vmem:[%s566 + $0x40] sm:$0x3]
    %v576 = vld [vmem:[%s0 + $0x13] sm:$0x1]
    %v577 = vperm.slane %v576, 0
    %v578 = vsub.f32 %v567, %v577
    %v579 = vsub.f32 %v568, %v577
    %v580 = vsub.f32 %v569, %v577
    %v581 = vsub.f32 %v570, %v577
    %v582 = vsub.f32 %v571, %v577
    %v583 = vsub.f32 %v572, %v577
    %v584 = vsub.f32 %v573, %v577
    %v585 = vsub.f32 %v574, %v577
    %v586 = vsub.f32 %v575, %v577
    %v587 = vand.u32 2147483647, %v578
    %v588 = vand.u32 2147483647, %v579
    %v589 = vand.u32 2147483647, %v580
    %v590 = vand.u32 2147483647, %v581
    %v591 = vand.u32 2147483647, %v582
    %v592 = vand.u32 2147483647, %v583
    %v593 = vand.u32 2147483647, %v584
    %v594 = vand.u32 2147483647, %v585
    %v595 = vand.u32 2147483647, %v586
    %v596 = vadd.f32 %v557, %v587
    %v597 = vadd.f32 %v558, %v588
    %v598 = vadd.f32 %v559, %v589
    %v599 = vadd.f32 %v560, %v590
    %v600 = vadd.f32 %v561, %v591
    %v601 = vadd.f32 %v562, %v592
    %v602 = vadd.f32 %v563, %v593
    %v603 = vadd.f32 %v564, %v594
    %v604 = vadd.f32 %v565, %v595
    %s605 = scalar_lea.vmem [#allocation2], 1080
    %v606 = vld [vmem:[%s605] sm:$0xff]
    %v607 = vld [vmem:[%s605 + $0x8] sm:$0xff]
    %v608 = vld [vmem:[%s605 + $0x10] sm:$0xff]
    %v609 = vld [vmem:[%s605 + $0x18] sm:$0xff]
    %v610 = vld [vmem:[%s605 + $0x20] sm:$0xff]
    %v611 = vld [vmem:[%s605 + $0x28] sm:$0xff]
    %v612 = vld [vmem:[%s605 + $0x30] sm:$0xff]
    %v613 = vld [vmem:[%s605 + $0x38] sm:$0xff]
    %v614 = vld [vmem:[%s605 + $0x40] sm:$0x3]
    %v615 = vld [vmem:[%s0 + $0x14] sm:$0x1]
    %v616 = vperm.slane %v615, 0
    %v617 = vsub.f32 %v606, %v616
    %v618 = vsub.f32 %v607, %v616
    %v619 = vsub.f32 %v608, %v616
    %v620 = vsub.f32 %v609, %v616
    %v621 = vsub.f32 %v610, %v616
    %v622 = vsub.f32 %v611, %v616
    %v623 = vsub.f32 %v612, %v616
    %v624 = vsub.f32 %v613, %v616
    %v625 = vsub.f32 %v614, %v616
    %v626 = vand.u32 2147483647, %v617
    %v627 = vand.u32 2147483647, %v618
    %v628 = vand.u32 2147483647, %v619
    %v629 = vand.u32 2147483647, %v620
    %v630 = vand.u32 2147483647, %v621
    %v631 = vand.u32 2147483647, %v622
    %v632 = vand.u32 2147483647, %v623
    %v633 = vand.u32 2147483647, %v624
    %v634 = vand.u32 2147483647, %v625
    %v635 = vadd.f32 %v596, %v626
    %v636 = vadd.f32 %v597, %v627
    %v637 = vadd.f32 %v598, %v628
    %v638 = vadd.f32 %v599, %v629
    %v639 = vadd.f32 %v600, %v630
    %v640 = vadd.f32 %v601, %v631
    %v641 = vadd.f32 %v602, %v632
    %v642 = vadd.f32 %v603, %v633
    %v643 = vadd.f32 %v604, %v634
    %s644 = scalar_lea.vmem [#allocation2], 1152
    %v645 = vld [vmem:[%s644] sm:$0xff]
    %v646 = vld [vmem:[%s644 + $0x8] sm:$0xff]
    %v647 = vld [vmem:[%s644 + $0x10] sm:$0xff]
    %v648 = vld [vmem:[%s644 + $0x18] sm:$0xff]
    %v649 = vld [vmem:[%s644 + $0x20] sm:$0xff]
    %v650 = vld [vmem:[%s644 + $0x28] sm:$0xff]
    %v651 = vld [vmem:[%s644 + $0x30] sm:$0xff]
    %v652 = vld [vmem:[%s644 + $0x38] sm:$0xff]
    %v653 = vld [vmem:[%s644 + $0x40] sm:$0x3]
    %v654 = vld [vmem:[%s0 + $0x15] sm:$0x1]
    %v655 = vperm.slane %v654, 0
    %v656 = vsub.f32 %v645, %v655
    %v657 = vsub.f32 %v646, %v655
    %v658 = vsub.f32 %v647, %v655
    %v659 = vsub.f32 %v648, %v655
    %v660 = vsub.f32 %v649, %v655
    %v661 = vsub.f32 %v650, %v655
    %v662 = vsub.f32 %v651, %v655
    %v663 = vsub.f32 %v652, %v655
    %v664 = vsub.f32 %v653, %v655
    %v665 = vand.u32 2147483647, %v656
    %v666 = vand.u32 2147483647, %v657
    %v667 = vand.u32 2147483647, %v658
    %v668 = vand.u32 2147483647, %v659
    %v669 = vand.u32 2147483647, %v660
    %v670 = vand.u32 2147483647, %v661
    %v671 = vand.u32 2147483647, %v662
    %v672 = vand.u32 2147483647, %v663
    %v673 = vand.u32 2147483647, %v664
    %v674 = vadd.f32 %v635, %v665
    %v675 = vadd.f32 %v636, %v666
    %v676 = vadd.f32 %v637, %v667
    %v677 = vadd.f32 %v638, %v668
    %v678 = vadd.f32 %v639, %v669
    %v679 = vadd.f32 %v640, %v670
    %v680 = vadd.f32 %v641, %v671
    %v681 = vadd.f32 %v642, %v672
    %v682 = vadd.f32 %v643, %v673
    %s683 = scalar_lea.vmem [#allocation2], 1224
    %v684 = vld [vmem:[%s683] sm:$0xff]
    %v685 = vld [vmem:[%s683 + $0x8] sm:$0xff]
    %v686 = vld [vmem:[%s683 + $0x10] sm:$0xff]
    %v687 = vld [vmem:[%s683 + $0x18] sm:$0xff]
    %v688 = vld [vmem:[%s683 + $0x20] sm:$0xff]
    %v689 = vld [vmem:[%s683 + $0x28] sm:$0xff]
    %v690 = vld [vmem:[%s683 + $0x30] sm:$0xff]
    %v691 = vld [vmem:[%s683 + $0x38] sm:$0xff]
    %v692 = vld [vmem:[%s683 + $0x40] sm:$0x3]
    %v693 = vld [vmem:[%s0 + $0x16] sm:$0x1]
    %v694 = vperm.slane %v693, 0
    %v695 = vsub.f32 %v684, %v694
    %v696 = vsub.f32 %v685, %v694
    %v697 = vsub.f32 %v686, %v694
    %v698 = vsub.f32 %v687, %v694
    %v699 = vsub.f32 %v688, %v694
    %v700 = vsub.f32 %v689, %v694
    %v701 = vsub.f32 %v690, %v694
    %v702 = vsub.f32 %v691, %v694
    %v703 = vsub.f32 %v692, %v694
    %v704 = vand.u32 2147483647, %v695
    %v705 = vand.u32 2147483647, %v696
    %v706 = vand.u32 2147483647, %v697
    %v707 = vand.u32 2147483647, %v698
    %v708 = vand.u32 2147483647, %v699
    %v709 = vand.u32 2147483647, %v700
    %v710 = vand.u32 2147483647, %v701
    %v711 = vand.u32 2147483647, %v702
    %v712 = vand.u32 2147483647, %v703
    %v713 = vadd.f32 %v674, %v704
    %v714 = vadd.f32 %v675, %v705
    %v715 = vadd.f32 %v676, %v706
    %v716 = vadd.f32 %v677, %v707
    %v717 = vadd.f32 %v678, %v708
    %v718 = vadd.f32 %v679, %v709
    %v719 = vadd.f32 %v680, %v710
    %v720 = vadd.f32 %v681, %v711
    %v721 = vadd.f32 %v682, %v712
    %s722 = scalar_lea.vmem [#allocation2], 1296
    %v723 = vld [vmem:[%s722] sm:$0xff]
    %v724 = vld [vmem:[%s722 + $0x8] sm:$0xff]
    %v725 = vld [vmem:[%s722 + $0x10] sm:$0xff]
    %v726 = vld [vmem:[%s722 + $0x18] sm:$0xff]
    %v727 = vld [vmem:[%s722 + $0x20] sm:$0xff]
    %v728 = vld [vmem:[%s722 + $0x28] sm:$0xff]
    %v729 = vld [vmem:[%s722 + $0x30] sm:$0xff]
    %v730 = vld [vmem:[%s722 + $0x38] sm:$0xff]
    %v731 = vld [vmem:[%s722 + $0x40] sm:$0x3]
    %v732 = vld [vmem:[%s0 + $0x17] sm:$0x1]
    %v733 = vperm.slane %v732, 0
    %v734 = vsub.f32 %v723, %v733
    %v735 = vsub.f32 %v724, %v733
    %v736 = vsub.f32 %v725, %v733
    %v737 = vsub.f32 %v726, %v733
    %v738 = vsub.f32 %v727, %v733
    %v739 = vsub.f32 %v728, %v733
    %v740 = vsub.f32 %v729, %v733
    %v741 = vsub.f32 %v730, %v733
    %v742 = vsub.f32 %v731, %v733
    %v743 = vand.u32 2147483647, %v734
    %v744 = vand.u32 2147483647, %v735
    %v745 = vand.u32 2147483647, %v736
    %v746 = vand.u32 2147483647, %v737
    %v747 = vand.u32 2147483647, %v738
    %v748 = vand.u32 2147483647, %v739
    %v749 = vand.u32 2147483647, %v740
    %v750 = vand.u32 2147483647, %v741
    %v751 = vand.u32 2147483647, %v742
    %v752 = vadd.f32 %v713, %v743
    %v753 = vadd.f32 %v714, %v744
    %v754 = vadd.f32 %v715, %v745
    %v755 = vadd.f32 %v716, %v746
    %v756 = vadd.f32 %v717, %v747
    %v757 = vadd.f32 %v718, %v748
    %v758 = vadd.f32 %v719, %v749
    %v759 = vadd.f32 %v720, %v750
    %v760 = vadd.f32 %v721, %v751
    %s761 = scalar_lea.vmem [#allocation2], 1368
    %v762 = vld [vmem:[%s761] sm:$0xff]
    %v763 = vld [vmem:[%s761 + $0x8] sm:$0xff]
    %v764 = vld [vmem:[%s761 + $0x10] sm:$0xff]
    %v765 = vld [vmem:[%s761 + $0x18] sm:$0xff]
    %v766 = vld [vmem:[%s761 + $0x20] sm:$0xff]
    %v767 = vld [vmem:[%s761 + $0x28] sm:$0xff]
    %v768 = vld [vmem:[%s761 + $0x30] sm:$0xff]
    %v769 = vld [vmem:[%s761 + $0x38] sm:$0xff]
    %v770 = vld [vmem:[%s761 + $0x40] sm:$0x3]
    %v771 = vld [vmem:[%s0 + $0x18] sm:$0x1]
    %v772 = vperm.slane %v771, 0
    %v773 = vsub.f32 %v762, %v772
    %v774 = vsub.f32 %v763, %v772
    %v775 = vsub.f32 %v764, %v772
    %v776 = vsub.f32 %v765, %v772
    %v777 = vsub.f32 %v766, %v772
    %v778 = vsub.f32 %v767, %v772
    %v779 = vsub.f32 %v768, %v772
    %v780 = vsub.f32 %v769, %v772
    %v781 = vsub.f32 %v770, %v772
    %v782 = vand.u32 2147483647, %v773
    %v783 = vand.u32 2147483647, %v774
    %v784 = vand.u32 2147483647, %v775
    %v785 = vand.u32 2147483647, %v776
    %v786 = vand.u32 2147483647, %v777
    %v787 = vand.u32 2147483647, %v778
    %v788 = vand.u32 2147483647, %v779
    %v789 = vand.u32 2147483647, %v780
    %v790 = vand.u32 2147483647, %v781
    %v791 = vadd.f32 %v752, %v782
    %v792 = vadd.f32 %v753, %v783
    %v793 = vadd.f32 %v754, %v784
    %v794 = vadd.f32 %v755, %v785
    %v795 = vadd.f32 %v756, %v786
    %v796 = vadd.f32 %v757, %v787
    %v797 = vadd.f32 %v758, %v788
    %v798 = vadd.f32 %v759, %v789
    %v799 = vadd.f32 %v760, %v790
    %s800 = scalar_lea.vmem [#allocation2], 1440
    %v801 = vld [vmem:[%s800] sm:$0xff]
    %v802 = vld [vmem:[%s800 + $0x8] sm:$0xff]
    %v803 = vld [vmem:[%s800 + $0x10] sm:$0xff]
    %v804 = vld [vmem:[%s800 + $0x18] sm:$0xff]
    %v805 = vld [vmem:[%s800 + $0x20] sm:$0xff]
    %v806 = vld [vmem:[%s800 + $0x28] sm:$0xff]
    %v807 = vld [vmem:[%s800 + $0x30] sm:$0xff]
    %v808 = vld [vmem:[%s800 + $0x38] sm:$0xff]
    %v809 = vld [vmem:[%s800 + $0x40] sm:$0x3]
    %v810 = vld [vmem:[%s0 + $0x19] sm:$0x1]
    %v811 = vperm.slane %v810, 0
    %v812 = vsub.f32 %v801, %v811
    %v813 = vsub.f32 %v802, %v811
    %v814 = vsub.f32 %v803, %v811
    %v815 = vsub.f32 %v804, %v811
    %v816 = vsub.f32 %v805, %v811
    %v817 = vsub.f32 %v806, %v811
    %v818 = vsub.f32 %v807, %v811
    %v819 = vsub.f32 %v808, %v811
    %v820 = vsub.f32 %v809, %v811
    %v821 = vand.u32 2147483647, %v812
    %v822 = vand.u32 2147483647, %v813
    %v823 = vand.u32 2147483647, %v814
    %v824 = vand.u32 2147483647, %v815
    %v825 = vand.u32 2147483647, %v816
    %v826 = vand.u32 2147483647, %v817
    %v827 = vand.u32 2147483647, %v818
    %v828 = vand.u32 2147483647, %v819
    %v829 = vand.u32 2147483647, %v820
    %v830 = vadd.f32 %v791, %v821
    %v831 = vadd.f32 %v792, %v822
    %v832 = vadd.f32 %v793, %v823
    %v833 = vadd.f32 %v794, %v824
    %v834 = vadd.f32 %v795, %v825
    %v835 = vadd.f32 %v796, %v826
    %v836 = vadd.f32 %v797, %v827
    %v837 = vadd.f32 %v798, %v828
    %v838 = vadd.f32 %v799, %v829
    %v839 = vld [vmem:[%s2] sm:$0xff]
    %v840 = vld [vmem:[%s2 + $0x8] sm:$0xff]
    %v841 = vld [vmem:[%s2 + $0x10] sm:$0xff]
    %v842 = vld [vmem:[%s2 + $0x18] sm:$0xff]
    %v843 = vld [vmem:[%s2 + $0x20] sm:$0xff]
    %v844 = vld [vmem:[%s2 + $0x28] sm:$0xff]
    %v845 = vld [vmem:[%s2 + $0x30] sm:$0xff]
    %v846 = vld [vmem:[%s2 + $0x38] sm:$0xff]
    %v847 = vld [vmem:[%s2 + $0x40] sm:$0xff]
    %v848 = vld [vmem:[%s2 + $0x48] sm:$0xff]
    %v849 = vld [vmem:[%s2 + $0x50] sm:$0xff]
    %v850 = vld [vmem:[%s2 + $0x58] sm:$0xff]
    %v851 = vld [vmem:[%s2 + $0x60] sm:$0xff]
    %v852 = vld [vmem:[%s2 + $0x68] sm:$0xff]
    %v853 = vld [vmem:[%s2 + $0x70] sm:$0xff]
    %v854 = vld [vmem:[%s2 + $0x78] sm:$0xff]
    %855 = vmatpush.msra.mxu0 %v854
    %856 = vmatpush.msra.mxu0 %v853
    %857 = vmatpush.msra.mxu0 %v852
    %858 = vmatpush.msra.mxu0 %v851
    %859 = vmatpush.msra.mxu0 %v850
    %860 = vmatpush.msra.mxu0 %v849
    %861 = vmatpush.msra.mxu0 %v848
    %862 = vmatpush.msra.mxu0 %v847
    %863 = vmatpush.msra.mxu0 %v846
    %864 = vmatpush.msra.mxu0 %v845
    %865 = vmatpush.msra.mxu0 %v844
    %866 = vmatpush.msra.mxu0 %v843
    %867 = vmatpush.msra.mxu0 %v842
    %868 = vmatpush.msra.mxu0 %v841
    %869 = vmatpush.msra.mxu0 %v840
    %870 = vmatpush.msra.mxu0 %v839
    %871 = vmatmul.f32.gmra.mxu0 %v830
    %v872 = vpop.f32.mrf.mxu0
    %v873 = vadd.f32 0.0, %v872
    %874 = vmatmul.f32.gmra.mxu0 %v831
    %v875 = vpop.f32.mrf.mxu0
    %v876 = vadd.f32 0.0, %v875
    %877 = vmatmul.f32.gmra.mxu0 %v832
    %v878 = vpop.f32.mrf.mxu0
    %v879 = vadd.f32 0.0, %v878
    %880 = vmatmul.f32.gmra.mxu0 %v833
    %v881 = vpop.f32.mrf.mxu0
    %v882 = vadd.f32 0.0, %v881
    %883 = vmatmul.f32.gmra.mxu0 %v834
    %v884 = vpop.f32.mrf.mxu0
    %v885 = vadd.f32 0.0, %v884
    %886 = vmatmul.f32.gmra.mxu0 %v835
    %v887 = vpop.f32.mrf.mxu0
    %v888 = vadd.f32 0.0, %v887
    %889 = vmatmul.f32.gmra.mxu0 %v836
    %v890 = vpop.f32.mrf.mxu0
    %v891 = vadd.f32 0.0, %v890
    %892 = vmatmul.f32.gmra.mxu0 %v837
    %v893 = vpop.f32.mrf.mxu0
    %v894 = vadd.f32 0.0, %v893
    %895 = vmatmul.f32.gmra.mxu0 %v838
    %v896 = vpop.f32.mrf.mxu0
    %v897 = vadd.f32 0.0, %v896
    %898 = vdwg.mxu0
    %vm899 = vcmask 64512
    %900 = vst.msk [vmem:[%s3] sm:$0xff] %vm899, %v873
    %901 = vst.msk [vmem:[%s3 + $0x8] sm:$0xff] %vm899, %v876
    %902 = vst.msk [vmem:[%s3 + $0x10] sm:$0xff] %vm899, %v879
    %903 = vst.msk [vmem:[%s3 + $0x18] sm:$0xff] %vm899, %v882
    %904 = vst.msk [vmem:[%s3 + $0x20] sm:$0xff] %vm899, %v885
    %905 = vst.msk [vmem:[%s3 + $0x28] sm:$0xff] %vm899, %v888
    %906 = vst.msk [vmem:[%s3 + $0x30] sm:$0xff] %vm899, %v891
    %907 = vst.msk [vmem:[%s3 + $0x38] sm:$0xff] %vm899, %v894
    %vm908 = vcmask 58368
    %909 = vst.msk [vmem:[%s3 + $0x40] sm:$0x3] %vm908, %v897
    %v910 = vld [vmem:[#allocation2] sm:$0xff]
    %v911 = vld [vmem:[#allocation2 + $0x8] sm:$0xff]
    %v912 = vld [vmem:[#allocation2 + $0x10] sm:$0xff]
    %v913 = vld [vmem:[#allocation2 + $0x18] sm:$0xff]
    %v914 = vld [vmem:[#allocation2 + $0x20] sm:$0xff]
    %v915 = vld [vmem:[#allocation2 + $0x28] sm:$0xff]
    %v916 = vld [vmem:[#allocation2 + $0x30] sm:$0xff]
    %v917 = vld [vmem:[#allocation2 + $0x38] sm:$0xff]
    %v918 = vld [vmem:[#allocation2 + $0x40] sm:$0x3]
    %s919 = scalar_lea.vmem %s0, 32
    %v920 = vld [vmem:[%s919 + $0x5] sm:$0x1]
    %v921 = vperm.slane %v920, 0
    %v922 = vsub.f32 %v910, %v921
    %v923 = vsub.f32 %v911, %v921
    %v924 = vsub.f32 %v912, %v921
    %v925 = vsub.f32 %v913, %v921
    %v926 = vsub.f32 %v914, %v921
    %v927 = vsub.f32 %v915, %v921
    %v928 = vsub.f32 %v916, %v921
    %v929 = vsub.f32 %v917, %v921
    %v930 = vsub.f32 %v918, %v921
    %v931 = vand.u32 2147483647, %v922
    %v932 = vand.u32 2147483647, %v923
    %v933 = vand.u32 2147483647, %v924
    %v934 = vand.u32 2147483647, %v925
    %v935 = vand.u32 2147483647, %v926
    %v936 = vand.u32 2147483647, %v927
    %v937 = vand.u32 2147483647, %v928
    %v938 = vand.u32 2147483647, %v929
    %v939 = vand.u32 2147483647, %v930
    %v940 = vld [vmem:[%s59] sm:$0xff]
    %v941 = vld [vmem:[%s59 + $0x8] sm:$0xff]
    %v942 = vld [vmem:[%s59 + $0x10] sm:$0xff]
    %v943 = vld [vmem:[%s59 + $0x18] sm:$0xff]
    %v944 = vld [vmem:[%s59 + $0x20] sm:$0xff]
    %v945 = vld [vmem:[%s59 + $0x28] sm:$0xff]
    %v946 = vld [vmem:[%s59 + $0x30] sm:$0xff]
    %v947 = vld [vmem:[%s59 + $0x38] sm:$0xff]
    %v948 = vld [vmem:[%s59 + $0x40] sm:$0x3]
    %v949 = vld [vmem:[%s919 + $0x6] sm:$0x1]
    %v950 = vperm.slane %v949, 0
    %v951 = vsub.f32 %v940, %v950
    %v952 = vsub.f32 %v941, %v950
    %v953 = vsub.f32 %v942, %v950
    %v954 = vsub.f32 %v943, %v950
    %v955 = vsub.f32 %v944, %v950
    %v956 = vsub.f32 %v945, %v950
    %v957 = vsub.f32 %v946, %v950
    %v958 = vsub.f32 %v947, %v950
    %v959 = vsub.f32 %v948, %v950
    %v960 = vand.u32 2147483647, %v951
    %v961 = vand.u32 2147483647, %v952
    %v962 = vand.u32 2147483647, %v953
    %v963 = vand.u32 2147483647, %v954
    %v964 = vand.u32 2147483647, %v955
    %v965 = vand.u32 2147483647, %v956
    %v966 = vand.u32 2147483647, %v957
    %v967 = vand.u32 2147483647, %v958
    %v968 = vand.u32 2147483647, %v959
    %v969 = vadd.f32 %v931, %v960
    %v970 = vadd.f32 %v932, %v961
    %v971 = vadd.f32 %v933, %v962
    %v972 = vadd.f32 %v934, %v963
    %v973 = vadd.f32 %v935, %v964
    %v974 = vadd.f32 %v936, %v965
    %v975 = vadd.f32 %v937, %v966
    %v976 = vadd.f32 %v938, %v967
    %v977 = vadd.f32 %v939, %v968
    %v978 = vld [vmem:[%s98] sm:$0xff]
    %v979 = vld [vmem:[%s98 + $0x8] sm:$0xff]
    %v980 = vld [vmem:[%s98 + $0x10] sm:$0xff]
    %v981 = vld [vmem:[%s98 + $0x18] sm:$0xff]
    %v982 = vld [vmem:[%s98 + $0x20] sm:$0xff]
    %v983 = vld [vmem:[%s98 + $0x28] sm:$0xff]
    %v984 = vld [vmem:[%s98 + $0x30] sm:$0xff]
    %v985 = vld [vmem:[%s98 + $0x38] sm:$0xff]
    %v986 = vld [vmem:[%s98 + $0x40] sm:$0x3]
    %v987 = vld [vmem:[%s919 + $0x7] sm:$0x1]
    %v988 = vperm.slane %v987, 0
    %v989 = vsub.f32 %v978, %v988
    %v990 = vsub.f32 %v979, %v988
    %v991 = vsub.f32 %v980, %v988
    %v992 = vsub.f32 %v981, %v988
    %v993 = vsub.f32 %v982, %v988
    %v994 = vsub.f32 %v983, %v988
    %v995 = vsub.f32 %v984, %v988
    %v996 = vsub.f32 %v985, %v988
    %v997 = vsub.f32 %v986, %v988
    %v998 = vand.u32 2147483647, %v989
    %v999 = vand.u32 2147483647, %v990
    %v1000 = vand.u32 2147483647, %v991
    %v1001 = vand.u32 2147483647, %v992
    %v1002 = vand.u32 2147483647, %v993
    %v1003 = vand.u32 2147483647, %v994
    %v1004 = vand.u32 2147483647, %v995
    %v1005 = vand.u32 2147483647, %v996
    %v1006 = vand.u32 2147483647, %v997
    %v1007 = vadd.f32 %v969, %v998
    %v1008 = vadd.f32 %v970, %v999
    %v1009 = vadd.f32 %v971, %v1000
    %v1010 = vadd.f32 %v972, %v1001
    %v1011 = vadd.f32 %v973, %v1002
    %v1012 = vadd.f32 %v974, %v1003
    %v1013 = vadd.f32 %v975, %v1004
    %v1014 = vadd.f32 %v976, %v1005
    %v1015 = vadd.f32 %v977, %v1006
    %v1016 = vld [vmem:[%s137] sm:$0xff]
    %v1017 = vld [vmem:[%s137 + $0x8] sm:$0xff]
    %v1018 = vld [vmem:[%s137 + $0x10] sm:$0xff]
    %v1019 = vld [vmem:[%s137 + $0x18] sm:$0xff]
    %v1020 = vld [vmem:[%s137 + $0x20] sm:$0xff]
    %v1021 = vld [vmem:[%s137 + $0x28] sm:$0xff]
    %v1022 = vld [vmem:[%s137 + $0x30] sm:$0xff]
    %v1023 = vld [vmem:[%s137 + $0x38] sm:$0xff]
    %v1024 = vld [vmem:[%s137 + $0x40] sm:$0x3]
    %v1025 = vld [vmem:[%s919 + $0x8] sm:$0x1]
    %v1026 = vperm.slane %v1025, 0
    %v1027 = vsub.f32 %v1016, %v1026
    %v1028 = vsub.f32 %v1017, %v1026
    %v1029 = vsub.f32 %v1018, %v1026
    %v1030 = vsub.f32 %v1019, %v1026
    %v1031 = vsub.f32 %v1020, %v1026
    %v1032 = vsub.f32 %v1021, %v1026
    %v1033 = vsub.f32 %v1022, %v1026
    %v1034 = vsub.f32 %v1023, %v1026
    %v1035 = vsub.f32 %v1024, %v1026
    %v1036 = vand.u32 2147483647, %v1027
    %v1037 = vand.u32 2147483647, %v1028
    %v1038 = vand.u32 2147483647, %v1029
    %v1039 = vand.u32 2147483647, %v1030
    %v1040 = vand.u32 2147483647, %v1031
    %v1041 = vand.u32 2147483647, %v1032
    %v1042 = vand.u32 2147483647, %v1033
    %v1043 = vand.u32 2147483647, %v1034
    %v1044 = vand.u32 2147483647, %v1035
    %v1045 = vadd.f32 %v1007, %v1036
    %v1046 = vadd.f32 %v1008, %v1037
    %v1047 = vadd.f32 %v1009, %v1038
    %v1048 = vadd.f32 %v1010, %v1039
    %v1049 = vadd.f32 %v1011, %v1040
    %v1050 = vadd.f32 %v1012, %v1041
    %v1051 = vadd.f32 %v1013, %v1042
    %v1052 = vadd.f32 %v1014, %v1043
    %v1053 = vadd.f32 %v1015, %v1044
    %v1054 = vld [vmem:[%s176] sm:$0xff]
    %v1055 = vld [vmem:[%s176 + $0x8] sm:$0xff]
    %v1056 = vld [vmem:[%s176 + $0x10] sm:$0xff]
    %v1057 = vld [vmem:[%s176 + $0x18] sm:$0xff]
    %v1058 = vld [vmem:[%s176 + $0x20] sm:$0xff]
    %v1059 = vld [vmem:[%s176 + $0x28] sm:$0xff]
    %v1060 = vld [vmem:[%s176 + $0x30] sm:$0xff]
    %v1061 = vld [vmem:[%s176 + $0x38] sm:$0xff]
    %v1062 = vld [vmem:[%s176 + $0x40] sm:$0x3]
    %v1063 = vld [vmem:[%s919 + $0x9] sm:$0x1]
    %v1064 = vperm.slane %v1063, 0
    %v1065 = vsub.f32 %v1054, %v1064
    %v1066 = vsub.f32 %v1055, %v1064
    %v1067 = vsub.f32 %v1056, %v1064
    %v1068 = vsub.f32 %v1057, %v1064
    %v1069 = vsub.f32 %v1058, %v1064
    %v1070 = vsub.f32 %v1059, %v1064
    %v1071 = vsub.f32 %v1060, %v1064
    %v1072 = vsub.f32 %v1061, %v1064
    %v1073 = vsub.f32 %v1062, %v1064
    %v1074 = vand.u32 2147483647, %v1065
    %v1075 = vand.u32 2147483647, %v1066
    %v1076 = vand.u32 2147483647, %v1067
    %v1077 = vand.u32 2147483647, %v1068
    %v1078 = vand.u32 2147483647, %v1069
    %v1079 = vand.u32 2147483647, %v1070
    %v1080 = vand.u32 2147483647, %v1071
    %v1081 = vand.u32 2147483647, %v1072
    %v1082 = vand.u32 2147483647, %v1073
    %v1083 = vadd.f32 %v1045, %v1074
    %v1084 = vadd.f32 %v1046, %v1075
    %v1085 = vadd.f32 %v1047, %v1076
    %v1086 = vadd.f32 %v1048, %v1077
    %v1087 = vadd.f32 %v1049, %v1078
    %v1088 = vadd.f32 %v1050, %v1079
    %v1089 = vadd.f32 %v1051, %v1080
    %v1090 = vadd.f32 %v1052, %v1081
    %v1091 = vadd.f32 %v1053, %v1082
    %v1092 = vld [vmem:[%s215] sm:$0xff]
    %v1093 = vld [vmem:[%s215 + $0x8] sm:$0xff]
    %v1094 = vld [vmem:[%s215 + $0x10] sm:$0xff]
    %v1095 = vld [vmem:[%s215 + $0x18] sm:$0xff]
    %v1096 = vld [vmem:[%s215 + $0x20] sm:$0xff]
    %v1097 = vld [vmem:[%s215 + $0x28] sm:$0xff]
    %v1098 = vld [vmem:[%s215 + $0x30] sm:$0xff]
    %v1099 = vld [vmem:[%s215 + $0x38] sm:$0xff]
    %v1100 = vld [vmem:[%s215 + $0x40] sm:$0x3]
    %v1101 = vld [vmem:[%s919 + $0xa] sm:$0x1]
    %v1102 = vperm.slane %v1101, 0
    %v1103 = vsub.f32 %v1092, %v1102
    %v1104 = vsub.f32 %v1093, %v1102
    %v1105 = vsub.f32 %v1094, %v1102
    %v1106 = vsub.f32 %v1095, %v1102
    %v1107 = vsub.f32 %v1096, %v1102
    %v1108 = vsub.f32 %v1097, %v1102
    %v1109 = vsub.f32 %v1098, %v1102
    %v1110 = vsub.f32 %v1099, %v1102
    %v1111 = vsub.f32 %v1100, %v1102
    %v1112 = vand.u32 2147483647, %v1103
    %v1113 = vand.u32 2147483647, %v1104
    %v1114 = vand.u32 2147483647, %v1105
    %v1115 = vand.u32 2147483647, %v1106
    %v1116 = vand.u32 2147483647, %v1107
    %v1117 = vand.u32 2147483647, %v1108
    %v1118 = vand.u32 2147483647, %v1109
    %v1119 = vand.u32 2147483647, %v1110
    %v1120 = vand.u32 2147483647, %v1111
    %v1121 = vadd.f32 %v1083, %v1112
    %v1122 = vadd.f32 %v1084, %v1113
    %v1123 = vadd.f32 %v1085, %v1114
    %v1124 = vadd.f32 %v1086, %v1115
    %v1125 = vadd.f32 %v1087, %v1116
    %v1126 = vadd.f32 %v1088, %v1117
    %v1127 = vadd.f32 %v1089, %v1118
    %v1128 = vadd.f32 %v1090, %v1119
    %v1129 = vadd.f32 %v1091, %v1120
    %v1130 = vld [vmem:[%s254] sm:$0xff]
    %v1131 = vld [vmem:[%s254 + $0x8] sm:$0xff]
    %v1132 = vld [vmem:[%s254 + $0x10] sm:$0xff]
    %v1133 = vld [vmem:[%s254 + $0x18] sm:$0xff]
    %v1134 = vld [vmem:[%s254 + $0x20] sm:$0xff]
    %v1135 = vld [vmem:[%s254 + $0x28] sm:$0xff]
    %v1136 = vld [vmem:[%s254 + $0x30] sm:$0xff]
    %v1137 = vld [vmem:[%s254 + $0x38] sm:$0xff]
    %v1138 = vld [vmem:[%s254 + $0x40] sm:$0x3]
    %v1139 = vld [vmem:[%s919 + $0xb] sm:$0x1]
    %v1140 = vperm.slane %v1139, 0
    %v1141 = vsub.f32 %v1130, %v1140
    %v1142 = vsub.f32 %v1131, %v1140
    %v1143 = vsub.f32 %v1132, %v1140
    %v1144 = vsub.f32 %v1133, %v1140
    %v1145 = vsub.f32 %v1134, %v1140
    %v1146 = vsub.f32 %v1135, %v1140
    %v1147 = vsub.f32 %v1136, %v1140
    %v1148 = vsub.f32 %v1137, %v1140
    %v1149 = vsub.f32 %v1138, %v1140
    %v1150 = vand.u32 2147483647, %v1141
    %v1151 = vand.u32 2147483647, %v1142
    %v1152 = vand.u32 2147483647, %v1143
    %v1153 = vand.u32 2147483647, %v1144
    %v1154 = vand.u32 2147483647, %v1145
    %v1155 = vand.u32 2147483647, %v1146
    %v1156 = vand.u32 2147483647, %v1147
    %v1157 = vand.u32 2147483647, %v1148
    %v1158 = vand.u32 2147483647, %v1149
    %v1159 = vadd.f32 %v1121, %v1150
    %v1160 = vadd.f32 %v1122, %v1151
    %v1161 = vadd.f32 %v1123, %v1152
    %v1162 = vadd.f32 %v1124, %v1153
    %v1163 = vadd.f32 %v1125, %v1154
    %v1164 = vadd.f32 %v1126, %v1155
    %v1165 = vadd.f32 %v1127, %v1156
    %v1166 = vadd.f32 %v1128, %v1157
    %v1167 = vadd.f32 %v1129, %v1158
    %v1168 = vld [vmem:[%s293] sm:$0xff]
    %v1169 = vld [vmem:[%s293 + $0x8] sm:$0xff]
    %v1170 = vld [vmem:[%s293 + $0x10] sm:$0xff]
    %v1171 = vld [vmem:[%s293 + $0x18] sm:$0xff]
    %v1172 = vld [vmem:[%s293 + $0x20] sm:$0xff]
    %v1173 = vld [vmem:[%s293 + $0x28] sm:$0xff]
    %v1174 = vld [vmem:[%s293 + $0x30] sm:$0xff]
    %v1175 = vld [vmem:[%s293 + $0x38] sm:$0xff]
    %v1176 = vld [vmem:[%s293 + $0x40] sm:$0x3]
    %v1177 = vld [vmem:[%s919 + $0xc] sm:$0x1]
    %v1178 = vperm.slane %v1177, 0
    %v1179 = vsub.f32 %v1168, %v1178
    %v1180 = vsub.f32 %v1169, %v1178
    %v1181 = vsub.f32 %v1170, %v1178
    %v1182 = vsub.f32 %v1171, %v1178
    %v1183 = vsub.f32 %v1172, %v1178
    %v1184 = vsub.f32 %v1173, %v1178
    %v1185 = vsub.f32 %v1174, %v1178
    %v1186 = vsub.f32 %v1175, %v1178
    %v1187 = vsub.f32 %v1176, %v1178
    %v1188 = vand.u32 2147483647, %v1179
    %v1189 = vand.u32 2147483647, %v1180
    %v1190 = vand.u32 2147483647, %v1181
    %v1191 = vand.u32 2147483647, %v1182
    %v1192 = vand.u32 2147483647, %v1183
    %v1193 = vand.u32 2147483647, %v1184
    %v1194 = vand.u32 2147483647, %v1185
    %v1195 = vand.u32 2147483647, %v1186
    %v1196 = vand.u32 2147483647, %v1187
    %v1197 = vadd.f32 %v1159, %v1188
    %v1198 = vadd.f32 %v1160, %v1189
    %v1199 = vadd.f32 %v1161, %v1190
    %v1200 = vadd.f32 %v1162, %v1191
    %v1201 = vadd.f32 %v1163, %v1192
    %v1202 = vadd.f32 %v1164, %v1193
    %v1203 = vadd.f32 %v1165, %v1194
    %v1204 = vadd.f32 %v1166, %v1195
    %v1205 = vadd.f32 %v1167, %v1196
    %v1206 = vld [vmem:[%s332] sm:$0xff]
    %v1207 = vld [vmem:[%s332 + $0x8] sm:$0xff]
    %v1208 = vld [vmem:[%s332 + $0x10] sm:$0xff]
    %v1209 = vld [vmem:[%s332 + $0x18] sm:$0xff]
    %v1210 = vld [vmem:[%s332 + $0x20] sm:$0xff]
    %v1211 = vld [vmem:[%s332 + $0x28] sm:$0xff]
    %v1212 = vld [vmem:[%s332 + $0x30] sm:$0xff]
    %v1213 = vld [vmem:[%s332 + $0x38] sm:$0xff]
    %v1214 = vld [vmem:[%s332 + $0x40] sm:$0x3]
    %v1215 = vld [vmem:[%s919 + $0xd] sm:$0x1]
    %v1216 = vperm.slane %v1215, 0
    %v1217 = vsub.f32 %v1206, %v1216
    %v1218 = vsub.f32 %v1207, %v1216
    %v1219 = vsub.f32 %v1208, %v1216
    %v1220 = vsub.f32 %v1209, %v1216
    %v1221 = vsub.f32 %v1210, %v1216
    %v1222 = vsub.f32 %v1211, %v1216
    %v1223 = vsub.f32 %v1212, %v1216
    %v1224 = vsub.f32 %v1213, %v1216
    %v1225 = vsub.f32 %v1214, %v1216
    %v1226 = vand.u32 2147483647, %v1217
    %v1227 = vand.u32 2147483647, %v1218
    %v1228 = vand.u32 2147483647, %v1219
    %v1229 = vand.u32 2147483647, %v1220
    %v1230 = vand.u32 2147483647, %v1221
    %v1231 = vand.u32 2147483647, %v1222
    %v1232 = vand.u32 2147483647, %v1223
    %v1233 = vand.u32 2147483647, %v1224
    %v1234 = vand.u32 2147483647, %v1225
    %v1235 = vadd.f32 %v1197, %v1226
    %v1236 = vadd.f32 %v1198, %v1227
    %v1237 = vadd.f32 %v1199, %v1228
    %v1238 = vadd.f32 %v1200, %v1229
    %v1239 = vadd.f32 %v1201, %v1230
    %v1240 = vadd.f32 %v1202, %v1231
    %v1241 = vadd.f32 %v1203, %v1232
    %v1242 = vadd.f32 %v1204, %v1233
    %v1243 = vadd.f32 %v1205, %v1234
    %v1244 = vld [vmem:[%s371] sm:$0xff]
    %v1245 = vld [vmem:[%s371 + $0x8] sm:$0xff]
    %v1246 = vld [vmem:[%s371 + $0x10] sm:$0xff]
    %v1247 = vld [vmem:[%s371 + $0x18] sm:$0xff]
    %v1248 = vld [vmem:[%s371 + $0x20] sm:$0xff]
    %v1249 = vld [vmem:[%s371 + $0x28] sm:$0xff]
    %v1250 = vld [vmem:[%s371 + $0x30] sm:$0xff]
    %v1251 = vld [vmem:[%s371 + $0x38] sm:$0xff]
    %v1252 = vld [vmem:[%s371 + $0x40] sm:$0x3]
    %v1253 = vld [vmem:[%s919 + $0xe] sm:$0x1]
    %v1254 = vperm.slane %v1253, 0
    %v1255 = vsub.f32 %v1244, %v1254
    %v1256 = vsub.f32 %v1245, %v1254
    %v1257 = vsub.f32 %v1246, %v1254
    %v1258 = vsub.f32 %v1247, %v1254
    %v1259 = vsub.f32 %v1248, %v1254
    %v1260 = vsub.f32 %v1249, %v1254
    %v1261 = vsub.f32 %v1250, %v1254
    %v1262 = vsub.f32 %v1251, %v1254
    %v1263 = vsub.f32 %v1252, %v1254
    %v1264 = vand.u32 2147483647, %v1255
    %v1265 = vand.u32 2147483647, %v1256
    %v1266 = vand.u32 2147483647, %v1257
    %v1267 = vand.u32 2147483647, %v1258
    %v1268 = vand.u32 2147483647, %v1259
    %v1269 = vand.u32 2147483647, %v1260
    %v1270 = vand.u32 2147483647, %v1261
    %v1271 = vand.u32 2147483647, %v1262
    %v1272 = vand.u32 2147483647, %v1263
    %v1273 = vadd.f32 %v1235, %v1264
    %v1274 = vadd.f32 %v1236, %v1265
    %v1275 = vadd.f32 %v1237, %v1266
    %v1276 = vadd.f32 %v1238, %v1267
    %v1277 = vadd.f32 %v1239, %v1268
    %v1278 = vadd.f32 %v1240, %v1269
    %v1279 = vadd.f32 %v1241, %v1270
    %v1280 = vadd.f32 %v1242, %v1271
    %v1281 = vadd.f32 %v1243, %v1272
    %v1282 = vld [vmem:[%s410] sm:$0xff]
    %v1283 = vld [vmem:[%s410 + $0x8] sm:$0xff]
    %v1284 = vld [vmem:[%s410 + $0x10] sm:$0xff]
    %v1285 = vld [vmem:[%s410 + $0x18] sm:$0xff]
    %v1286 = vld [vmem:[%s410 + $0x20] sm:$0xff]
    %v1287 = vld [vmem:[%s410 + $0x28] sm:$0xff]
    %v1288 = vld [vmem:[%s410 + $0x30] sm:$0xff]
    %v1289 = vld [vmem:[%s410 + $0x38] sm:$0xff]
    %v1290 = vld [vmem:[%s410 + $0x40] sm:$0x3]
    %v1291 = vld [vmem:[%s919 + $0xf] sm:$0x1]
    %v1292 = vperm.slane %v1291, 0
    %v1293 = vsub.f32 %v1282, %v1292
    %v1294 = vsub.f32 %v1283, %v1292
    %v1295 = vsub.f32 %v1284, %v1292
    %v1296 = vsub.f32 %v1285, %v1292
    %v1297 = vsub.f32 %v1286, %v1292
    %v1298 = vsub.f32 %v1287, %v1292
    %v1299 = vsub.f32 %v1288, %v1292
    %v1300 = vsub.f32 %v1289, %v1292
    %v1301 = vsub.f32 %v1290, %v1292
    %v1302 = vand.u32 2147483647, %v1293
    %v1303 = vand.u32 2147483647, %v1294
    %v1304 = vand.u32 2147483647, %v1295
    %v1305 = vand.u32 2147483647, %v1296
    %v1306 = vand.u32 2147483647, %v1297
    %v1307 = vand.u32 2147483647, %v1298
    %v1308 = vand.u32 2147483647, %v1299
    %v1309 = vand.u32 2147483647, %v1300
    %v1310 = vand.u32 2147483647, %v1301
    %v1311 = vadd.f32 %v1273, %v1302
    %v1312 = vadd.f32 %v1274, %v1303
    %v1313 = vadd.f32 %v1275, %v1304
    %v1314 = vadd.f32 %v1276, %v1305
    %v1315 = vadd.f32 %v1277, %v1306
    %v1316 = vadd.f32 %v1278, %v1307
    %v1317 = vadd.f32 %v1279, %v1308
    %v1318 = vadd.f32 %v1280, %v1309
    %v1319 = vadd.f32 %v1281, %v1310
    %v1320 = vld [vmem:[%s449] sm:$0xff]
    %v1321 = vld [vmem:[%s449 + $0x8] sm:$0xff]
    %v1322 = vld [vmem:[%s449 + $0x10] sm:$0xff]
    %v1323 = vld [vmem:[%s449 + $0x18] sm:$0xff]
    %v1324 = vld [vmem:[%s449 + $0x20] sm:$0xff]
    %v1325 = vld [vmem:[%s449 + $0x28] sm:$0xff]
    %v1326 = vld [vmem:[%s449 + $0x30] sm:$0xff]
    %v1327 = vld [vmem:[%s449 + $0x38] sm:$0xff]
    %v1328 = vld [vmem:[%s449 + $0x40] sm:$0x3]
    %v1329 = vld [vmem:[%s919 + $0x10] sm:$0x1]
    %v1330 = vperm.slane %v1329, 0
    %v1331 = vsub.f32 %v1320, %v1330
    %v1332 = vsub.f32 %v1321, %v1330
    %v1333 = vsub.f32 %v1322, %v1330
    %v1334 = vsub.f32 %v1323, %v1330
    %v1335 = vsub.f32 %v1324, %v1330
    %v1336 = vsub.f32 %v1325, %v1330
    %v1337 = vsub.f32 %v1326, %v1330
    %v1338 = vsub.f32 %v1327, %v1330
    %v1339 = vsub.f32 %v1328, %v1330
    %v1340 = vand.u32 2147483647, %v1331
    %v1341 = vand.u32 2147483647, %v1332
    %v1342 = vand.u32 2147483647, %v1333
    %v1343 = vand.u32 2147483647, %v1334
    %v1344 = vand.u32 2147483647, %v1335
    %v1345 = vand.u32 2147483647, %v1336
    %v1346 = vand.u32 2147483647, %v1337
    %v1347 = vand.u32 2147483647, %v1338
    %v1348 = vand.u32 2147483647, %v1339
    %v1349 = vadd.f32 %v1311, %v1340
    %v1350 = vadd.f32 %v1312, %v1341
    %v1351 = vadd.f32 %v1313, %v1342
    %v1352 = vadd.f32 %v1314, %v1343
    %v1353 = vadd.f32 %v1315, %v1344
    %v1354 = vadd.f32 %v1316, %v1345
    %v1355 = vadd.f32 %v1317, %v1346
    %v1356 = vadd.f32 %v1318, %v1347
    %v1357 = vadd.f32 %v1319, %v1348
    %v1358 = vld [vmem:[%s488] sm:$0xff]
    %v1359 = vld [vmem:[%s488 + $0x8] sm:$0xff]
    %v1360 = vld [vmem:[%s488 + $0x10] sm:$0xff]
    %v1361 = vld [vmem:[%s488 + $0x18] sm:$0xff]
    %v1362 = vld [vmem:[%s488 + $0x20] sm:$0xff]
    %v1363 = vld [vmem:[%s488 + $0x28] sm:$0xff]
    %v1364 = vld [vmem:[%s488 + $0x30] sm:$0xff]
    %v1365 = vld [vmem:[%s488 + $0x38] sm:$0xff]
    %v1366 = vld [vmem:[%s488 + $0x40] sm:$0x3]
    %v1367 = vld [vmem:[%s919 + $0x11] sm:$0x1]
    %v1368 = vperm.slane %v1367, 0
    %v1369 = vsub.f32 %v1358, %v1368
    %v1370 = vsub.f32 %v1359, %v1368
    %v1371 = vsub.f32 %v1360, %v1368
    %v1372 = vsub.f32 %v1361, %v1368
    %v1373 = vsub.f32 %v1362, %v1368
    %v1374 = vsub.f32 %v1363, %v1368
    %v1375 = vsub.f32 %v1364, %v1368
    %v1376 = vsub.f32 %v1365, %v1368
    %v1377 = vsub.f32 %v1366, %v1368
    %v1378 = vand.u32 2147483647, %v1369
    %v1379 = vand.u32 2147483647, %v1370
    %v1380 = vand.u32 2147483647, %v1371
    %v1381 = vand.u32 2147483647, %v1372
    %v1382 = vand.u32 2147483647, %v1373
    %v1383 = vand.u32 2147483647, %v1374
    %v1384 = vand.u32 2147483647, %v1375
    %v1385 = vand.u32 2147483647, %v1376
    %v1386 = vand.u32 2147483647, %v1377
    %v1387 = vadd.f32 %v1349, %v1378
    %v1388 = vadd.f32 %v1350, %v1379
    %v1389 = vadd.f32 %v1351, %v1380
    %v1390 = vadd.f32 %v1352, %v1381
    %v1391 = vadd.f32 %v1353, %v1382
    %v1392 = vadd.f32 %v1354, %v1383
    %v1393 = vadd.f32 %v1355, %v1384
    %v1394 = vadd.f32 %v1356, %v1385
    %v1395 = vadd.f32 %v1357, %v1386
    %v1396 = vld [vmem:[%s527] sm:$0xff]
    %v1397 = vld [vmem:[%s527 + $0x8] sm:$0xff]
    %v1398 = vld [vmem:[%s527 + $0x10] sm:$0xff]
    %v1399 = vld [vmem:[%s527 + $0x18] sm:$0xff]
    %v1400 = vld [vmem:[%s527 + $0x20] sm:$0xff]
    %v1401 = vld [vmem:[%s527 + $0x28] sm:$0xff]
    %v1402 = vld [vmem:[%s527 + $0x30] sm:$0xff]
    %v1403 = vld [vmem:[%s527 + $0x38] sm:$0xff]
    %v1404 = vld [vmem:[%s527 + $0x40] sm:$0x3]
    %v1405 = vld [vmem:[%s919 + $0x12] sm:$0x1]
    %v1406 = vperm.slane %v1405, 0
    %v1407 = vsub.f32 %v1396, %v1406
    %v1408 = vsub.f32 %v1397, %v1406
    %v1409 = vsub.f32 %v1398, %v1406
    %v1410 = vsub.f32 %v1399, %v1406
    %v1411 = vsub.f32 %v1400, %v1406
    %v1412 = vsub.f32 %v1401, %v1406
    %v1413 = vsub.f32 %v1402, %v1406
    %v1414 = vsub.f32 %v1403, %v1406
    %v1415 = vsub.f32 %v1404, %v1406
    %v1416 = vand.u32 2147483647, %v1407
    %v1417 = vand.u32 2147483647, %v1408
    %v1418 = vand.u32 2147483647, %v1409
    %v1419 = vand.u32 2147483647, %v1410
    %v1420 = vand.u32 2147483647, %v1411
    %v1421 = vand.u32 2147483647, %v1412
    %v1422 = vand.u32 2147483647, %v1413
    %v1423 = vand.u32 2147483647, %v1414
    %v1424 = vand.u32 2147483647, %v1415
    %v1425 = vadd.f32 %v1387, %v1416
    %v1426 = vadd.f32 %v1388, %v1417
    %v1427 = vadd.f32 %v1389, %v1418
    %v1428 = vadd.f32 %v1390, %v1419
    %v1429 = vadd.f32 %v1391, %v1420
    %v1430 = vadd.f32 %v1392, %v1421
    %v1431 = vadd.f32 %v1393, %v1422
    %v1432 = vadd.f32 %v1394, %v1423
    %v1433 = vadd.f32 %v1395, %v1424
    %v1434 = vld [vmem:[%s566] sm:$0xff]
    %v1435 = vld [vmem:[%s566 + $0x8] sm:$0xff]
    %v1436 = vld [vmem:[%s566 + $0x10] sm:$0xff]
    %v1437 = vld [vmem:[%s566 + $0x18] sm:$0xff]
    %v1438 = vld [vmem:[%s566 + $0x20] sm:$0xff]
    %v1439 = vld [vmem:[%s566 + $0x28] sm:$0xff]
    %v1440 = vld [vmem:[%s566 + $0x30] sm:$0xff]
    %v1441 = vld [vmem:[%s566 + $0x38] sm:$0xff]
    %v1442 = vld [vmem:[%s566 + $0x40] sm:$0x3]
    %v1443 = vld [vmem:[%s919 + $0x13] sm:$0x1]
    %v1444 = vperm.slane %v1443, 0
    %v1445 = vsub.f32 %v1434, %v1444
    %v1446 = vsub.f32 %v1435, %v1444
    %v1447 = vsub.f32 %v1436, %v1444
    %v1448 = vsub.f32 %v1437, %v1444
    %v1449 = vsub.f32 %v1438, %v1444
    %v1450 = vsub.f32 %v1439, %v1444
    %v1451 = vsub.f32 %v1440, %v1444
    %v1452 = vsub.f32 %v1441, %v1444
    %v1453 = vsub.f32 %v1442, %v1444
    %v1454 = vand.u32 2147483647, %v1445
    %v1455 = vand.u32 2147483647, %v1446
    %v1456 = vand.u32 2147483647, %v1447
    %v1457 = vand.u32 2147483647, %v1448
    %v1458 = vand.u32 2147483647, %v1449
    %v1459 = vand.u32 2147483647, %v1450
    %v1460 = vand.u32 2147483647, %v1451
    %v1461 = vand.u32 2147483647, %v1452
    %v1462 = vand.u32 2147483647, %v1453
    %v1463 = vadd.f32 %v1425, %v1454
    %v1464 = vadd.f32 %v1426, %v1455
    %v1465 = vadd.f32 %v1427, %v1456
    %v1466 = vadd.f32 %v1428, %v1457
    %v1467 = vadd.f32 %v1429, %v1458
    %v1468 = vadd.f32 %v1430, %v1459
    %v1469 = vadd.f32 %v1431, %v1460
    %v1470 = vadd.f32 %v1432, %v1461
    %v1471 = vadd.f32 %v1433, %v1462
    %v1472 = vld [vmem:[%s605] sm:$0xff]
    %v1473 = vld [vmem:[%s605 + $0x8] sm:$0xff]
    %v1474 = vld [vmem:[%s605 + $0x10] sm:$0xff]
    %v1475 = vld [vmem:[%s605 + $0x18] sm:$0xff]
    %v1476 = vld [vmem:[%s605 + $0x20] sm:$0xff]
    %v1477 = vld [vmem:[%s605 + $0x28] sm:$0xff]
    %v1478 = vld [vmem:[%s605 + $0x30] sm:$0xff]
    %v1479 = vld [vmem:[%s605 + $0x38] sm:$0xff]
    %v1480 = vld [vmem:[%s605 + $0x40] sm:$0x3]
    %v1481 = vld [vmem:[%s919 + $0x14] sm:$0x1]
    %v1482 = vperm.slane %v1481, 0
    %v1483 = vsub.f32 %v1472, %v1482
    %v1484 = vsub.f32 %v1473, %v1482
    %v1485 = vsub.f32 %v1474, %v1482
    %v1486 = vsub.f32 %v1475, %v1482
    %v1487 = vsub.f32 %v1476, %v1482
    %v1488 = vsub.f32 %v1477, %v1482
    %v1489 = vsub.f32 %v1478, %v1482
    %v1490 = vsub.f32 %v1479, %v1482
    %v1491 = vsub.f32 %v1480, %v1482
    %v1492 = vand.u32 2147483647, %v1483
    %v1493 = vand.u32 2147483647, %v1484
    %v1494 = vand.u32 2147483647, %v1485
    %v1495 = vand.u32 2147483647, %v1486
    %v1496 = vand.u32 2147483647, %v1487
    %v1497 = vand.u32 2147483647, %v1488
    %v1498 = vand.u32 2147483647, %v1489
    %v1499 = vand.u32 2147483647, %v1490
    %v1500 = vand.u32 2147483647, %v1491
    %v1501 = vadd.f32 %v1463, %v1492
    %v1502 = vadd.f32 %v1464, %v1493
    %v1503 = vadd.f32 %v1465, %v1494
    %v1504 = vadd.f32 %v1466, %v1495
    %v1505 = vadd.f32 %v1467, %v1496
    %v1506 = vadd.f32 %v1468, %v1497
    %v1507 = vadd.f32 %v1469, %v1498
    %v1508 = vadd.f32 %v1470, %v1499
    %v1509 = vadd.f32 %v1471, %v1500
    %v1510 = vld [vmem:[%s644] sm:$0xff]
    %v1511 = vld [vmem:[%s644 + $0x8] sm:$0xff]
    %v1512 = vld [vmem:[%s644 + $0x10] sm:$0xff]
    %v1513 = vld [vmem:[%s644 + $0x18] sm:$0xff]
    %v1514 = vld [vmem:[%s644 + $0x20] sm:$0xff]
    %v1515 = vld [vmem:[%s644 + $0x28] sm:$0xff]
    %v1516 = vld [vmem:[%s644 + $0x30] sm:$0xff]
    %v1517 = vld [vmem:[%s644 + $0x38] sm:$0xff]
    %v1518 = vld [vmem:[%s644 + $0x40] sm:$0x3]
    %v1519 = vld [vmem:[%s919 + $0x15] sm:$0x1]
    %v1520 = vperm.slane %v1519, 0
    %v1521 = vsub.f32 %v1510, %v1520
    %v1522 = vsub.f32 %v1511, %v1520
    %v1523 = vsub.f32 %v1512, %v1520
    %v1524 = vsub.f32 %v1513, %v1520
    %v1525 = vsub.f32 %v1514, %v1520
    %v1526 = vsub.f32 %v1515, %v1520
    %v1527 = vsub.f32 %v1516, %v1520
    %v1528 = vsub.f32 %v1517, %v1520
    %v1529 = vsub.f32 %v1518, %v1520
    %v1530 = vand.u32 2147483647, %v1521
    %v1531 = vand.u32 2147483647, %v1522
    %v1532 = vand.u32 2147483647, %v1523
    %v1533 = vand.u32 2147483647, %v1524
    %v1534 = vand.u32 2147483647, %v1525
    %v1535 = vand.u32 2147483647, %v1526
    %v1536 = vand.u32 2147483647, %v1527
    %v1537 = vand.u32 2147483647, %v1528
    %v1538 = vand.u32 2147483647, %v1529
    %v1539 = vadd.f32 %v1501, %v1530
    %v1540 = vadd.f32 %v1502, %v1531
    %v1541 = vadd.f32 %v1503, %v1532
    %v1542 = vadd.f32 %v1504, %v1533
    %v1543 = vadd.f32 %v1505, %v1534
    %v1544 = vadd.f32 %v1506, %v1535
    %v1545 = vadd.f32 %v1507, %v1536
    %v1546 = vadd.f32 %v1508, %v1537
    %v1547 = vadd.f32 %v1509, %v1538
    %v1548 = vld [vmem:[%s683] sm:$0xff]
    %v1549 = vld [vmem:[%s683 + $0x8] sm:$0xff]
    %v1550 = vld [vmem:[%s683 + $0x10] sm:$0xff]
    %v1551 = vld [vmem:[%s683 + $0x18] sm:$0xff]
    %v1552 = vld [vmem:[%s683 + $0x20] sm:$0xff]
    %v1553 = vld [vmem:[%s683 + $0x28] sm:$0xff]
    %v1554 = vld [vmem:[%s683 + $0x30] sm:$0xff]
    %v1555 = vld [vmem:[%s683 + $0x38] sm:$0xff]
    %v1556 = vld [vmem:[%s683 + $0x40] sm:$0x3]
    %v1557 = vld [vmem:[%s919 + $0x16] sm:$0x1]
    %v1558 = vperm.slane %v1557, 0
    %v1559 = vsub.f32 %v1548, %v1558
    %v1560 = vsub.f32 %v1549, %v1558
    %v1561 = vsub.f32 %v1550, %v1558
    %v1562 = vsub.f32 %v1551, %v1558
    %v1563 = vsub.f32 %v1552, %v1558
    %v1564 = vsub.f32 %v1553, %v1558
    %v1565 = vsub.f32 %v1554, %v1558
    %v1566 = vsub.f32 %v1555, %v1558
    %v1567 = vsub.f32 %v1556, %v1558
    %v1568 = vand.u32 2147483647, %v1559
    %v1569 = vand.u32 2147483647, %v1560
    %v1570 = vand.u32 2147483647, %v1561
    %v1571 = vand.u32 2147483647, %v1562
    %v1572 = vand.u32 2147483647, %v1563
    %v1573 = vand.u32 2147483647, %v1564
    %v1574 = vand.u32 2147483647, %v1565
    %v1575 = vand.u32 2147483647, %v1566
    %v1576 = vand.u32 2147483647, %v1567
    %v1577 = vadd.f32 %v1539, %v1568
    %v1578 = vadd.f32 %v1540, %v1569
    %v1579 = vadd.f32 %v1541, %v1570
    %v1580 = vadd.f32 %v1542, %v1571
    %v1581 = vadd.f32 %v1543, %v1572
    %v1582 = vadd.f32 %v1544, %v1573
    %v1583 = vadd.f32 %v1545, %v1574
    %v1584 = vadd.f32 %v1546, %v1575
    %v1585 = vadd.f32 %v1547, %v1576
    %v1586 = vld [vmem:[%s722] sm:$0xff]
    %v1587 = vld [vmem:[%s722 + $0x8] sm:$0xff]
    %v1588 = vld [vmem:[%s722 + $0x10] sm:$0xff]
    %v1589 = vld [vmem:[%s722 + $0x18] sm:$0xff]
    %v1590 = vld [vmem:[%s722 + $0x20] sm:$0xff]
    %v1591 = vld [vmem:[%s722 + $0x28] sm:$0xff]
    %v1592 = vld [vmem:[%s722 + $0x30] sm:$0xff]
    %v1593 = vld [vmem:[%s722 + $0x38] sm:$0xff]
    %v1594 = vld [vmem:[%s722 + $0x40] sm:$0x3]
    %v1595 = vld [vmem:[%s919 + $0x17] sm:$0x1]
    %v1596 = vperm.slane %v1595, 0
    %v1597 = vsub.f32 %v1586, %v1596
    %v1598 = vsub.f32 %v1587, %v1596
    %v1599 = vsub.f32 %v1588, %v1596
    %v1600 = vsub.f32 %v1589, %v1596
    %v1601 = vsub.f32 %v1590, %v1596
    %v1602 = vsub.f32 %v1591, %v1596
    %v1603 = vsub.f32 %v1592, %v1596
    %v1604 = vsub.f32 %v1593, %v1596
    %v1605 = vsub.f32 %v1594, %v1596
    %v1606 = vand.u32 2147483647, %v1597
    %v1607 = vand.u32 2147483647, %v1598
    %v1608 = vand.u32 2147483647, %v1599
    %v1609 = vand.u32 2147483647, %v1600
    %v1610 = vand.u32 2147483647, %v1601
    %v1611 = vand.u32 2147483647, %v1602
    %v1612 = vand.u32 2147483647, %v1603
    %v1613 = vand.u32 2147483647, %v1604
    %v1614 = vand.u32 2147483647, %v1605
    %v1615 = vadd.f32 %v1577, %v1606
    %v1616 = vadd.f32 %v1578, %v1607
    %v1617 = vadd.f32 %v1579, %v1608
    %v1618 = vadd.f32 %v1580, %v1609
    %v1619 = vadd.f32 %v1581, %v1610
    %v1620 = vadd.f32 %v1582, %v1611
    %v1621 = vadd.f32 %v1583, %v1612
    %v1622 = vadd.f32 %v1584, %v1613
    %v1623 = vadd.f32 %v1585, %v1614
    %v1624 = vld [vmem:[%s761] sm:$0xff]
    %v1625 = vld [vmem:[%s761 + $0x8] sm:$0xff]
    %v1626 = vld [vmem:[%s761 + $0x10] sm:$0xff]
    %v1627 = vld [vmem:[%s761 + $0x18] sm:$0xff]
    %v1628 = vld [vmem:[%s761 + $0x20] sm:$0xff]
    %v1629 = vld [vmem:[%s761 + $0x28] sm:$0xff]
    %v1630 = vld [vmem:[%s761 + $0x30] sm:$0xff]
    %v1631 = vld [vmem:[%s761 + $0x38] sm:$0xff]
    %v1632 = vld [vmem:[%s761 + $0x40] sm:$0x3]
    %v1633 = vld [vmem:[%s919 + $0x18] sm:$0x1]
    %v1634 = vperm.slane %v1633, 0
    %v1635 = vsub.f32 %v1624, %v1634
    %v1636 = vsub.f32 %v1625, %v1634
    %v1637 = vsub.f32 %v1626, %v1634
    %v1638 = vsub.f32 %v1627, %v1634
    %v1639 = vsub.f32 %v1628, %v1634
    %v1640 = vsub.f32 %v1629, %v1634
    %v1641 = vsub.f32 %v1630, %v1634
    %v1642 = vsub.f32 %v1631, %v1634
    %v1643 = vsub.f32 %v1632, %v1634
    %v1644 = vand.u32 2147483647, %v1635
    %v1645 = vand.u32 2147483647, %v1636
    %v1646 = vand.u32 2147483647, %v1637
    %v1647 = vand.u32 2147483647, %v1638
    %v1648 = vand.u32 2147483647, %v1639
    %v1649 = vand.u32 2147483647, %v1640
    %v1650 = vand.u32 2147483647, %v1641
    %v1651 = vand.u32 2147483647, %v1642
    %v1652 = vand.u32 2147483647, %v1643
    %v1653 = vadd.f32 %v1615, %v1644
    %v1654 = vadd.f32 %v1616, %v1645
    %v1655 = vadd.f32 %v1617, %v1646
    %v1656 = vadd.f32 %v1618, %v1647
    %v1657 = vadd.f32 %v1619, %v1648
    %v1658 = vadd.f32 %v1620, %v1649
    %v1659 = vadd.f32 %v1621, %v1650
    %v1660 = vadd.f32 %v1622, %v1651
    %v1661 = vadd.f32 %v1623, %v1652
    %v1662 = vld [vmem:[%s800] sm:$0xff]
    %v1663 = vld [vmem:[%s800 + $0x8] sm:$0xff]
    %v1664 = vld [vmem:[%s800 + $0x10] sm:$0xff]
    %v1665 = vld [vmem:[%s800 + $0x18] sm:$0xff]
    %v1666 = vld [vmem:[%s800 + $0x20] sm:$0xff]
    %v1667 = vld [vmem:[%s800 + $0x28] sm:$0xff]
    %v1668 = vld [vmem:[%s800 + $0x30] sm:$0xff]
    %v1669 = vld [vmem:[%s800 + $0x38] sm:$0xff]
    %v1670 = vld [vmem:[%s800 + $0x40] sm:$0x3]
    %v1671 = vld [vmem:[%s919 + $0x19] sm:$0x1]
    %v1672 = vperm.slane %v1671, 0
    %v1673 = vsub.f32 %v1662, %v1672
    %v1674 = vsub.f32 %v1663, %v1672
    %v1675 = vsub.f32 %v1664, %v1672
    %v1676 = vsub.f32 %v1665, %v1672
    %v1677 = vsub.f32 %v1666, %v1672
    %v1678 = vsub.f32 %v1667, %v1672
    %v1679 = vsub.f32 %v1668, %v1672
    %v1680 = vsub.f32 %v1669, %v1672
    %v1681 = vsub.f32 %v1670, %v1672
    %v1682 = vand.u32 2147483647, %v1673
    %v1683 = vand.u32 2147483647, %v1674
    %v1684 = vand.u32 2147483647, %v1675
    %v1685 = vand.u32 2147483647, %v1676
    %v1686 = vand.u32 2147483647, %v1677
    %v1687 = vand.u32 2147483647, %v1678
    %v1688 = vand.u32 2147483647, %v1679
    %v1689 = vand.u32 2147483647, %v1680
    %v1690 = vand.u32 2147483647, %v1681
    %v1691 = vadd.f32 %v1653, %v1682
    %v1692 = vadd.f32 %v1654, %v1683
    %v1693 = vadd.f32 %v1655, %v1684
    %v1694 = vadd.f32 %v1656, %v1685
    %v1695 = vadd.f32 %v1657, %v1686
    %v1696 = vadd.f32 %v1658, %v1687
    %v1697 = vadd.f32 %v1659, %v1688
    %v1698 = vadd.f32 %v1660, %v1689
    %v1699 = vadd.f32 %v1661, %v1690
    %v1700 = vld [vmem:[%s2] sm:$0xff]
    %v1701 = vld [vmem:[%s2 + $0x8] sm:$0xff]
    %v1702 = vld [vmem:[%s2 + $0x10] sm:$0xff]
    %v1703 = vld [vmem:[%s2 + $0x18] sm:$0xff]
    %v1704 = vld [vmem:[%s2 + $0x20] sm:$0xff]
    %v1705 = vld [vmem:[%s2 + $0x28] sm:$0xff]
    %v1706 = vld [vmem:[%s2 + $0x30] sm:$0xff]
    %v1707 = vld [vmem:[%s2 + $0x38] sm:$0xff]
    %v1708 = vld [vmem:[%s2 + $0x40] sm:$0xff]
    %v1709 = vld [vmem:[%s2 + $0x48] sm:$0xff]
    %v1710 = vld [vmem:[%s2 + $0x50] sm:$0xff]
    %v1711 = vld [vmem:[%s2 + $0x58] sm:$0xff]
    %v1712 = vld [vmem:[%s2 + $0x60] sm:$0xff]
    %v1713 = vld [vmem:[%s2 + $0x68] sm:$0xff]
    %v1714 = vld [vmem:[%s2 + $0x70] sm:$0xff]
    %v1715 = vld [vmem:[%s2 + $0x78] sm:$0xff]
    %1716 = vmatpush.msra.mxu0 %v1715
    %1717 = vmatpush.msra.mxu0 %v1714
    %1718 = vmatpush.msra.mxu0 %v1713
    %1719 = vmatpush.msra.mxu0 %v1712
    %1720 = vmatpush.msra.mxu0 %v1711
    %1721 = vmatpush.msra.mxu0 %v1710
    %1722 = vmatpush.msra.mxu0 %v1709
    %1723 = vmatpush.msra.mxu0 %v1708
    %1724 = vmatpush.msra.mxu0 %v1707
    %1725 = vmatpush.msra.mxu0 %v1706
    %1726 = vmatpush.msra.mxu0 %v1705
    %1727 = vmatpush.msra.mxu0 %v1704
    %1728 = vmatpush.msra.mxu0 %v1703
    %1729 = vmatpush.msra.mxu0 %v1702
    %1730 = vmatpush.msra.mxu0 %v1701
    %1731 = vmatpush.msra.mxu0 %v1700
    %1732 = vmatmul.f32.gmra.mxu0 %v1691
    %v1733 = vpop.f32.mrf.mxu0
    %v1734 = vadd.f32 0.0, %v1733
    %1735 = vmatmul.f32.gmra.mxu0 %v1692
    %v1736 = vpop.f32.mrf.mxu0
    %v1737 = vadd.f32 0.0, %v1736
    %1738 = vmatmul.f32.gmra.mxu0 %v1693
    %v1739 = vpop.f32.mrf.mxu0
    %v1740 = vadd.f32 0.0, %v1739
    %1741 = vmatmul.f32.gmra.mxu0 %v1694
    %v1742 = vpop.f32.mrf.mxu0
    %v1743 = vadd.f32 0.0, %v1742
    %1744 = vmatmul.f32.gmra.mxu0 %v1695
    %v1745 = vpop.f32.mrf.mxu0
    %v1746 = vadd.f32 0.0, %v1745
    %1747 = vmatmul.f32.gmra.mxu0 %v1696
    %v1748 = vpop.f32.mrf.mxu0
    %v1749 = vadd.f32 0.0, %v1748
    %1750 = vmatmul.f32.gmra.mxu0 %v1697
    %v1751 = vpop.f32.mrf.mxu0
    %v1752 = vadd.f32 0.0, %v1751
    %1753 = vmatmul.f32.gmra.mxu0 %v1698
    %v1754 = vpop.f32.mrf.mxu0
    %v1755 = vadd.f32 0.0, %v1754
    %1756 = vmatmul.f32.gmra.mxu0 %v1699
    %v1757 = vpop.f32.mrf.mxu0
    %v1758 = vadd.f32 0.0, %v1757
    %1759 = vdwg.mxu0
    %s1760 = scalar_lea.vmem %s3, 72
    %1761 = vst.msk [vmem:[%s1760] sm:$0xff] %vm899, %v1734
    %1762 = vst.msk [vmem:[%s1760 + $0x8] sm:$0xff] %vm899, %v1737
    %1763 = vst.msk [vmem:[%s1760 + $0x10] sm:$0xff] %vm899, %v1740
    %1764 = vst.msk [vmem:[%s1760 + $0x18] sm:$0xff] %vm899, %v1743
    %1765 = vst.msk [vmem:[%s1760 + $0x20] sm:$0xff] %vm899, %v1746
    %1766 = vst.msk [vmem:[%s1760 + $0x28] sm:$0xff] %vm899, %v1749
    %1767 = vst.msk [vmem:[%s1760 + $0x30] sm:$0xff] %vm899, %v1752
    %1768 = vst.msk [vmem:[%s1760 + $0x38] sm:$0xff] %vm899, %v1755
    %1769 = vst.msk [vmem:[%s1760 + $0x40] sm:$0x3] %vm908, %v1758
    // Predicated region
    $region18: #{tpu_custom_call.1} parent=1 // pred_check
      _
    $region19: #{tpu_custom_call.1} parent=1 // pred_check_branch
      %1771 = sbr.rel (0) target = $region21
    $region20: #{tpu_custom_call.1} parent=1 // pred_region
      _
    $region21: #{tpu_custom_call.1} parent=1 // pred_fallthru
      _
    // Predicated region
    $region22: #{tpu_custom_call.1} parent=1 // pred_check
      _
    $region23: #{tpu_custom_call.1} parent=1 // pred_check_branch
      %1773 = sbr.rel (0) target = $region25
    $region24: #{tpu_custom_call.1} parent=1 // pred_region
      _
    $region25: #{tpu_custom_call.1} parent=1 // pred_fallthru
      _
    %1774 = vsyncpa [#allocation3], 1

</llo_original>
